<compile_context>
chip_gen: v6e
topology: v6e:2x2x1
jax: 0.10.0
libtpu: 0.0.40
codegen_flags: <defaults>
</compile_context>

<pallas_src>
import numpy as np
import jax
import jax.numpy as jnp
from jax import lax
from jax.experimental import pallas as pl
from jax.experimental.pallas import tpu as pltpu


# ----------------------------------------------------------------------------
# Pallas kernel: bidirectional LSTM recurrence + head (Linear + Sigmoid)
# ----------------------------------------------------------------------------
def bilstm_encoder_kernel(x_ref, wih_ref, b_ref, whh_ref, wlin_ref, blin_ref,
                          out_ref, gates_ref):
    T, B, E = x_ref.shape            # B here is the padded per-block batch (8)
    G8 = wih_ref.shape[1]            # 8H  (i|f|g|o blocks, each [fwd|bwd])
    H2 = G8 // 4                     # 2H
    H = H2 // 2

    wih = wih_ref[...]               # (E, 8H)
    b = b_ref[...]                   # (1, 8H)

    # ---- Stage 1: hoisted input projection (fwd+bwd), out of the recurrence.
    # Static short loop over T; each step is one small MXU dot into the
    # 3-D VMEM scratch (T, B, 8H).  Bias (ih + hh) folded in once here.
    for t in range(T):
        gates_ref[t] = (
            jnp.dot(x_ref[t], wih, preferred_element_type=jnp.float32) + b)

    whh = whh_ref[...]                                 # (2H, 8H) block-diagonal

    lane = lax.broadcasted_iota(jnp.int32, (B, G8), 1)
    fwd_mask = (lane % H2) < H                         # forward-direction lanes
    g_mask = (lane >= 2 * H2) & (lane < 3 * H2)        # tanh (g-gate) lanes

    # ---- Stage 2: serial recurrence; per step only one (B,2H)@(2H,8H) dot.
    def step(t, carry):
        h, c = carry                                   # each (B, 2H) = [fwd|bwd]
        # fwd direction reads time t, bwd direction reads time T-1-t.
        gx = jnp.where(fwd_mask, gates_ref[t], gates_ref[T - 1 - t])
        gates = gx + jnp.dot(h, whh, preferred_element_type=jnp.float32)
        # Full-slab activations combined by lane mask (2 EUP passes + select).
        acts = jnp.where(g_mask, jnp.tanh(gates), jax.nn.sigmoid(gates))
        i = acts[:, 0:H2]
        f = acts[:, H2:2 * H2]
        g = acts[:, 2 * H2:3 * H2]
        o = acts[:, 3 * H2:4 * H2]
        c_new = f * c + i * g
        h_new = o * jnp.tanh(c_new)
        return (h_new, c_new)

    zeros = jnp.zeros((B, H2), jnp.float32)
    h, _ = lax.fori_loop(0, T, step, (zeros, zeros), unroll=True)

    # h == concat(h_fwd_final, h_bwd_final) -> (B, 2H); Dropout is identity in
    # eval mode.  Linear + Sigmoid head:
    logits = (jnp.dot(h, wlin_ref[...], preferred_element_type=jnp.float32)
              + blin_ref[...])
    out_ref[...] = jax.nn.sigmoid(logits)


# ----------------------------------------------------------------------------
# Glue: weight fusion (gate reorder + block-diagonal recurrent weights)
# ----------------------------------------------------------------------------
def _fuse_bilstm_weights(params):
    """Returns (wih_all (E,8H), whh_block (2H,8H), b_all (1,8H)) in the column
    layout [i(2H) | f(2H) | g(2H) | o(2H)], each block = [fwd H | bwd H]."""
    H = params["w_hh_f"].shape[1]
    wih_f_t = params["w_ih_f"].T.astype(jnp.float32)      # (E, 4H)
    wih_b_t = params["w_ih_b"].T.astype(jnp.float32)
    whh_f_t = params["w_hh_f"].T.astype(jnp.float32)      # (H, 4H)
    whh_b_t = params["w_hh_b"].T.astype(jnp.float32)
    b_f = (params["b_ih_f"] + params["b_hh_f"]).astype(jnp.float32)
    b_b = (params["b_ih_b"] + params["b_hh_b"]).astype(jnp.float32)

    zH = jnp.zeros((H, H), jnp.float32)
    wih_cols, whh_cols, b_cols = [], [], []
    for k in range(4):                                    # gate order i, f, g, o
        sl = slice(k * H, (k + 1) * H)
        wih_cols += [wih_f_t[:, sl], wih_b_t[:, sl]]
        whh_cols.append(jnp.concatenate([
            jnp.concatenate([whh_f_t[:, sl], zH], axis=0),        # fwd columns
            jnp.concatenate([zH, whh_b_t[:, sl]], axis=0)],       # bwd columns
            axis=1))                                              # (2H, 2H)
        b_cols += [b_f[sl], b_b[sl]]
    wih_all = jnp.concatenate(wih_cols, axis=1)           # (E, 8H)
    whh_block = jnp.concatenate(whh_cols, axis=1)         # (2H, 8H)
    b_all = jnp.concatenate(b_cols)[None, :]              # (1, 8H)
    return wih_all, whh_block, b_all


# ----------------------------------------------------------------------------
# Wrapper: embedding gather, batch padding, pallas_call with a parallel grid
# ----------------------------------------------------------------------------
def encoder_forward(tokens, params):
    B, T = tokens.shape
    H = params["w_hh_f"].shape[1]
    E = params["embedding"].shape[1]
    O = params["w_lin"].shape[0]

    # Embedding gather directly into time-major (T, B, E).
    x = params["embedding"][tokens.T].astype(jnp.float32)

    # Pad batch to a multiple of 8 so sublanes / MXU rows are filled.
    BB = 8
    Bp = ((B + BB - 1) // BB) * BB
    if Bp != B:
        x = jnp.pad(x, ((0, 0), (0, Bp - B), (0, 0)))

    wih_all, whh_block, b_all = _fuse_bilstm_weights(params)
    wlin = params["w_lin"].T.astype(jnp.float32)           # (2H, O)
    blin = params["b_lin"][None, :].astype(jnp.float32)    # (1, O)

    out = pl.pallas_call(
        bilstm_encoder_kernel,
        out_shape=jax.ShapeDtypeStruct((Bp, O), jnp.float32),
        grid_spec=pltpu.PrefetchScalarGridSpec(
            num_scalar_prefetch=0,
            grid=(Bp // BB,),
            in_specs=[
                pl.BlockSpec((T, BB, E), lambda i: (0, i, 0)),
                pl.BlockSpec((E, 8 * H), lambda i: (0, 0)),
                pl.BlockSpec((1, 8 * H), lambda i: (0, 0)),
                pl.BlockSpec((2 * H, 8 * H), lambda i: (0, 0)),
                pl.BlockSpec((2 * H, O), lambda i: (0, 0)),
                pl.BlockSpec((1, O), lambda i: (0, 0)),
            ],
            out_specs=pl.BlockSpec((BB, O), lambda i: (i, 0)),
            scratch_shapes=[pltpu.VMEM((T, BB, 8 * H), jnp.float32)],
        ),
        compiler_params=pltpu.CompilerParams(
            dimension_semantics=("parallel",)),
    )(x, wih_all, b_all, whh_block, wlin, blin)
    return out[:B]


# ----------------------------------------------------------------------------
# Deterministic parameter init (xavier_normal as in init_weights)
# ----------------------------------------------------------------------------
def xavier_normal(key, shape):
    fan_out, fan_in = shape[0], shape[1]
    std = (2.0 / (fan_in + fan_out)) ** 0.5
    return std * jax.random.normal(key, shape, jnp.float32)


def make_params(key, vocab, E, H, out_size):
    ks = jax.random.split(key, 10)
    return {
        "embedding": xavier_normal(ks[0], (vocab, E)),
        # forward direction
        "w_ih_f": xavier_normal(ks[1], (4 * H, E)),
        "w_hh_f": xavier_normal(ks[2], (4 * H, H)),
        "b_ih_f": 0.01 * jax.random.normal(ks[3], (4 * H,), jnp.float32),
        "b_hh_f": jnp.zeros((4 * H,), jnp.float32),
        # backward direction
        "w_ih_b": xavier_normal(ks[4], (4 * H, E)),
        "w_hh_b": xavier_normal(ks[5], (4 * H, H)),
        "b_ih_b": 0.01 * jax.random.normal(ks[6], (4 * H,), jnp.float32),
        "b_hh_b": jnp.zeros((4 * H,), jnp.float32),
        # head: Linear(2H -> out_size)
        "w_lin": xavier_normal(ks[7], (out_size, 2 * H)),
        "b_lin": 0.01 * jax.random.normal(ks[8], (out_size,), jnp.float32),
    }


# ----------------------------------------------------------------------------
# Pure-JAX reference (same math) for a correctness check
# ----------------------------------------------------------------------------
def encoder_reference(tokens, params):
    emb = params["embedding"][tokens]
    x = jnp.transpose(emb, (1, 0, 2)).astype(jnp.float32)   # (T, B, E)
    T, B, _ = x.shape
    H = params["w_hh_f"].shape[1]

    def cell(x_t, h, c, wih, whh, b):
        g = x_t @ wih.T + h @ whh.T + b
        i = jax.nn.sigmoid(g[:, 0:H])
        f = jax.nn.sigmoid(g[:, H:2 * H])
        gg = jnp.tanh(g[:, 2 * H:3 * H])
        o = jax.nn.sigmoid(g[:, 3 * H:4 * H])
        c = f * c + i * gg
        h = o * jnp.tanh(c)
        return h, c

    bf = params["b_ih_f"] + params["b_hh_f"]
    bb = params["b_ih_b"] + params["b_hh_b"]
    h_f = c_f = h_b = c_b = jnp.zeros((B, H), jnp.float32)
    for t in range(T):
        h_f, c_f = cell(x[t], h_f, c_f, params["w_ih_f"], params["w_hh_f"], bf)
        h_b, c_b = cell(x[T - 1 - t], h_b, c_b,
                        params["w_ih_b"], params["w_hh_b"], bb)
    hcat = jnp.concatenate([h_f, h_b], axis=1)
    return jax.nn.sigmoid(hcat @ params["w_lin"].T + params["b_lin"])


if __name__ == "__main__":
    # Small args consistent with BiLSTM(args):
    #   vocab_size=50, enc_emd_size=32, enc_hidden_size=32,
    #   enc_layers=1, enc_out_size=16, rnn_type='LSTM', eval-mode dropout.
    vocab, E, H, OUT = 50, 32, 32, 16
    B, T = 2, 8

    key = jax.random.PRNGKey(0)
    k_tok, k_par = jax.random.split(key)
    tokens = jax.random.randint(k_tok, (B, T), 0, vocab, dtype=jnp.int32)
    params = make_params(k_par, vocab, E, H, OUT)

    out = encoder_forward(tokens, params)
    out = jax.block_until_ready(out)

    ref = jax.block_until_ready(encoder_reference(tokens, params))
    assert out.shape == (B, OUT)
    np.testing.assert_allclose(np.asarray(out), np.asarray(ref),
                               rtol=1e-4, atol=1e-4)
    print("KERNEL_OK")
</pallas_src>

<mosaic_0001>
module attributes {stable_mosaic.version = 11 : i64} {
  func.func @bilstm_encoder_kernel(%arg0: i32, %arg1: memref<8x8x32xf32, #tpu.memory_space<vmem>>, %arg2: memref<32x256xf32, #tpu.memory_space<vmem>>, %arg3: memref<1x256xf32, #tpu.memory_space<vmem>>, %arg4: memref<64x256xf32, #tpu.memory_space<vmem>>, %arg5: memref<64x16xf32, #tpu.memory_space<vmem>>, %arg6: memref<1x16xf32, #tpu.memory_space<vmem>>, %arg7: memref<8x16xf32, #tpu.memory_space<vmem>>, %arg8: memref<8x8x256xf32, #tpu.memory_space<vmem>>) attributes {dimension_semantics = [#tpu.dimension_semantics<parallel>], iteration_bounds = array<i64: 1>, scalar_prefetch = 0 : i64, scratch_operands = 1 : i64, tpu.core_type = #tpu.core_type<tc>, window_params = [{transform_indices = @transform_0, window_bounds = array<i64: 8, 8, 32>}, {pipeline_mode = #tpu.pipeline_mode<synchronous>, transform_indices = @transform_1, window_bounds = array<i64: 32, 256>}, {pipeline_mode = #tpu.pipeline_mode<synchronous>, transform_indices = @transform_2, window_bounds = array<i64: 1, 256>}, {pipeline_mode = #tpu.pipeline_mode<synchronous>, transform_indices = @transform_3, window_bounds = array<i64: 64, 256>}, {pipeline_mode = #tpu.pipeline_mode<synchronous>, transform_indices = @transform_4, window_bounds = array<i64: 64, 16>}, {pipeline_mode = #tpu.pipeline_mode<synchronous>, transform_indices = @transform_5, window_bounds = array<i64: 1, 16>}, {transform_indices = @transform_6, window_bounds = array<i64: 8, 16>}]} {
    %c0 = arith.constant 0 : index
    %c0_0 = arith.constant 0 : index
    %0 = vector.load %arg2[%c0, %c0_0] : memref<32x256xf32, #tpu.memory_space<vmem>>, vector<32x256xf32>
    %c0_1 = arith.constant 0 : index
    %c0_2 = arith.constant 0 : index
    %1 = vector.load %arg3[%c0_1, %c0_2] : memref<1x256xf32, #tpu.memory_space<vmem>>, vector<1x256xf32>
    %c0_3 = arith.constant 0 : index
    %c0_4 = arith.constant 0 : index
    %c0_5 = arith.constant 0 : index
    %2 = vector.load %arg1[%c0_3, %c0_4, %c0_5] : memref<8x8x32xf32, #tpu.memory_space<vmem>>, vector<1x8x32xf32>
    %3 = vector.shape_cast %2 : vector<1x8x32xf32> to vector<8x32xf32>
    %cst = arith.constant dense<0.000000e+00> : vector<8x256xf32>
    %4 = tpu.matmul %3, %0, %cst {dimension_numbers = #tpu.dot_dimension_numbers<[1], [0], [0], [1], [0, 0, 1, 1], [], []>} : vector<8x32xf32>, vector<32x256xf32>, vector<8x256xf32> -> vector<8x256xf32>
    %5 = vector.broadcast %1 : vector<1x256xf32> to vector<8x256xf32>
    %6 = arith.addf %4, %5 : vector<8x256xf32>
    %c0_6 = arith.constant 0 : index
    %c0_7 = arith.constant 0 : index
    %c0_8 = arith.constant 0 : index
    %7 = vector.load %arg8[%c0_6, %c0_7, %c0_8] : memref<8x8x256xf32, #tpu.memory_space<vmem>>, vector<1x8x256xf32>
    %8 = vector.shape_cast %7 : vector<1x8x256xf32> to vector<8x256xf32>
    %9 = vector.shape_cast %6 : vector<8x256xf32> to vector<1x8x256xf32>
    tpu.vector_store %arg8[%c0_6, %c0_7, %c0_8], %9 {strides = array<i32>} : memref<8x8x256xf32, #tpu.memory_space<vmem>>, vector<1x8x256xf32>,
    %c1 = arith.constant 1 : index
    %c0_9 = arith.constant 0 : index
    %c0_10 = arith.constant 0 : index
    %10 = vector.load %arg1[%c1, %c0_9, %c0_10] : memref<8x8x32xf32, #tpu.memory_space<vmem>>, vector<1x8x32xf32>
    %11 = vector.shape_cast %10 : vector<1x8x32xf32> to vector<8x32xf32>
    %cst_11 = arith.constant dense<0.000000e+00> : vector<8x256xf32>
    %12 = tpu.matmul %11, %0, %cst_11 {dimension_numbers = #tpu.dot_dimension_numbers<[1], [0], [0], [1], [0, 0, 1, 1], [], []>} : vector<8x32xf32>, vector<32x256xf32>, vector<8x256xf32> -> vector<8x256xf32>
    %13 = vector.broadcast %1 : vector<1x256xf32> to vector<8x256xf32>
    %14 = arith.addf %12, %13 : vector<8x256xf32>
    %c1_12 = arith.constant 1 : index
    %c0_13 = arith.constant 0 : index
    %c0_14 = arith.constant 0 : index
    %15 = vector.load %arg8[%c1_12, %c0_13, %c0_14] : memref<8x8x256xf32, #tpu.memory_space<vmem>>, vector<1x8x256xf32>
    %16 = vector.shape_cast %15 : vector<1x8x256xf32> to vector<8x256xf32>
    %17 = vector.shape_cast %14 : vector<8x256xf32> to vector<1x8x256xf32>
    tpu.vector_store %arg8[%c1_12, %c0_13, %c0_14], %17 {strides = array<i32>} : memref<8x8x256xf32, #tpu.memory_space<vmem>>, vector<1x8x256xf32>,
    %c2 = arith.constant 2 : index
    %c0_15 = arith.constant 0 : index
    %c0_16 = arith.constant 0 : index
    %18 = vector.load %arg1[%c2, %c0_15, %c0_16] : memref<8x8x32xf32, #tpu.memory_space<vmem>>, vector<1x8x32xf32>
    %19 = vector.shape_cast %18 : vector<1x8x32xf32> to vector<8x32xf32>
    %cst_17 = arith.constant dense<0.000000e+00> : vector<8x256xf32>
    %20 = tpu.matmul %19, %0, %cst_17 {dimension_numbers = #tpu.dot_dimension_numbers<[1], [0], [0], [1], [0, 0, 1, 1], [], []>} : vector<8x32xf32>, vector<32x256xf32>, vector<8x256xf32> -> vector<8x256xf32>
    %21 = vector.broadcast %1 : vector<1x256xf32> to vector<8x256xf32>
    %22 = arith.addf %20, %21 : vector<8x256xf32>
    %c2_18 = arith.constant 2 : index
    %c0_19 = arith.constant 0 : index
    %c0_20 = arith.constant 0 : index
    %23 = vector.load %arg8[%c2_18, %c0_19, %c0_20] : memref<8x8x256xf32, #tpu.memory_space<vmem>>, vector<1x8x256xf32>
    %24 = vector.shape_cast %23 : vector<1x8x256xf32> to vector<8x256xf32>
    %25 = vector.shape_cast %22 : vector<8x256xf32> to vector<1x8x256xf32>
    tpu.vector_store %arg8[%c2_18, %c0_19, %c0_20], %25 {strides = array<i32>} : memref<8x8x256xf32, #tpu.memory_space<vmem>>, vector<1x8x256xf32>,
    %c3 = arith.constant 3 : index
    %c0_21 = arith.constant 0 : index
    %c0_22 = arith.constant 0 : index
    %26 = vector.load %arg1[%c3, %c0_21, %c0_22] : memref<8x8x32xf32, #tpu.memory_space<vmem>>, vector<1x8x32xf32>
    %27 = vector.shape_cast %26 : vector<1x8x32xf32> to vector<8x32xf32>
    %cst_23 = arith.constant dense<0.000000e+00> : vector<8x256xf32>
    %28 = tpu.matmul %27, %0, %cst_23 {dimension_numbers = #tpu.dot_dimension_numbers<[1], [0], [0], [1], [0, 0, 1, 1], [], []>} : vector<8x32xf32>, vector<32x256xf32>, vector<8x256xf32> -> vector<8x256xf32>
    %29 = vector.broadcast %1 : vector<1x256xf32> to vector<8x256xf32>
    %30 = arith.addf %28, %29 : vector<8x256xf32>
    %c3_24 = arith.constant 3 : index
    %c0_25 = arith.constant 0 : index
    %c0_26 = arith.constant 0 : index
    %31 = vector.load %arg8[%c3_24, %c0_25, %c0_26] : memref<8x8x256xf32, #tpu.memory_space<vmem>>, vector<1x8x256xf32>
    %32 = vector.shape_cast %31 : vector<1x8x256xf32> to vector<8x256xf32>
    %33 = vector.shape_cast %30 : vector<8x256xf32> to vector<1x8x256xf32>
    tpu.vector_store %arg8[%c3_24, %c0_25, %c0_26], %33 {strides = array<i32>} : memref<8x8x256xf32, #tpu.memory_space<vmem>>, vector<1x8x256xf32>,
    %c4 = arith.constant 4 : index
    %c0_27 = arith.constant 0 : index
    %c0_28 = arith.constant 0 : index
    %34 = vector.load %arg1[%c4, %c0_27, %c0_28] : memref<8x8x32xf32, #tpu.memory_space<vmem>>, vector<1x8x32xf32>
    %35 = vector.shape_cast %34 : vector<1x8x32xf32> to vector<8x32xf32>
    %cst_29 = arith.constant dense<0.000000e+00> : vector<8x256xf32>
    %36 = tpu.matmul %35, %0, %cst_29 {dimension_numbers = #tpu.dot_dimension_numbers<[1], [0], [0], [1], [0, 0, 1, 1], [], []>} : vector<8x32xf32>, vector<32x256xf32>, vector<8x256xf32> -> vector<8x256xf32>
    %37 = vector.broadcast %1 : vector<1x256xf32> to vector<8x256xf32>
    %38 = arith.addf %36, %37 : vector<8x256xf32>
    %c4_30 = arith.constant 4 : index
    %c0_31 = arith.constant 0 : index
    %c0_32 = arith.constant 0 : index
    %39 = vector.load %arg8[%c4_30, %c0_31, %c0_32] : memref<8x8x256xf32, #tpu.memory_space<vmem>>, vector<1x8x256xf32>
    %40 = vector.shape_cast %39 : vector<1x8x256xf32> to vector<8x256xf32>
    %41 = vector.shape_cast %38 : vector<8x256xf32> to vector<1x8x256xf32>
    tpu.vector_store %arg8[%c4_30, %c0_31, %c0_32], %41 {strides = array<i32>} : memref<8x8x256xf32, #tpu.memory_space<vmem>>, vector<1x8x256xf32>,
    %c5 = arith.constant 5 : index
    %c0_33 = arith.constant 0 : index
    %c0_34 = arith.constant 0 : index
    %42 = vector.load %arg1[%c5, %c0_33, %c0_34] : memref<8x8x32xf32, #tpu.memory_space<vmem>>, vector<1x8x32xf32>
    %43 = vector.shape_cast %42 : vector<1x8x32xf32> to vector<8x32xf32>
    %cst_35 = arith.constant dense<0.000000e+00> : vector<8x256xf32>
    %44 = tpu.matmul %43, %0, %cst_35 {dimension_numbers = #tpu.dot_dimension_numbers<[1], [0], [0], [1], [0, 0, 1, 1], [], []>} : vector<8x32xf32>, vector<32x256xf32>, vector<8x256xf32> -> vector<8x256xf32>
    %45 = vector.broadcast %1 : vector<1x256xf32> to vector<8x256xf32>
    %46 = arith.addf %44, %45 : vector<8x256xf32>
    %c5_36 = arith.constant 5 : index
    %c0_37 = arith.constant 0 : index
    %c0_38 = arith.constant 0 : index
    %47 = vector.load %arg8[%c5_36, %c0_37, %c0_38] : memref<8x8x256xf32, #tpu.memory_space<vmem>>, vector<1x8x256xf32>
    %48 = vector.shape_cast %47 : vector<1x8x256xf32> to vector<8x256xf32>
    %49 = vector.shape_cast %46 : vector<8x256xf32> to vector<1x8x256xf32>
    tpu.vector_store %arg8[%c5_36, %c0_37, %c0_38], %49 {strides = array<i32>} : memref<8x8x256xf32, #tpu.memory_space<vmem>>, vector<1x8x256xf32>,
    %c6 = arith.constant 6 : index
    %c0_39 = arith.constant 0 : index
    %c0_40 = arith.constant 0 : index
    %50 = vector.load %arg1[%c6, %c0_39, %c0_40] : memref<8x8x32xf32, #tpu.memory_space<vmem>>, vector<1x8x32xf32>
    %51 = vector.shape_cast %50 : vector<1x8x32xf32> to vector<8x32xf32>
    %cst_41 = arith.constant dense<0.000000e+00> : vector<8x256xf32>
    %52 = tpu.matmul %51, %0, %cst_41 {dimension_numbers = #tpu.dot_dimension_numbers<[1], [0], [0], [1], [0, 0, 1, 1], [], []>} : vector<8x32xf32>, vector<32x256xf32>, vector<8x256xf32> -> vector<8x256xf32>
    %53 = vector.broadcast %1 : vector<1x256xf32> to vector<8x256xf32>
    %54 = arith.addf %52, %53 : vector<8x256xf32>
    %c6_42 = arith.constant 6 : index
    %c0_43 = arith.constant 0 : index
    %c0_44 = arith.constant 0 : index
    %55 = vector.load %arg8[%c6_42, %c0_43, %c0_44] : memref<8x8x256xf32, #tpu.memory_space<vmem>>, vector<1x8x256xf32>
    %56 = vector.shape_cast %55 : vector<1x8x256xf32> to vector<8x256xf32>
    %57 = vector.shape_cast %54 : vector<8x256xf32> to vector<1x8x256xf32>
    tpu.vector_store %arg8[%c6_42, %c0_43, %c0_44], %57 {strides = array<i32>} : memref<8x8x256xf32, #tpu.memory_space<vmem>>, vector<1x8x256xf32>,
    %c7 = arith.constant 7 : index
    %c0_45 = arith.constant 0 : index
    %c0_46 = arith.constant 0 : index
    %58 = vector.load %arg1[%c7, %c0_45, %c0_46] : memref<8x8x32xf32, #tpu.memory_space<vmem>>, vector<1x8x32xf32>
    %59 = vector.shape_cast %58 : vector<1x8x32xf32> to vector<8x32xf32>
    %cst_47 = arith.constant dense<0.000000e+00> : vector<8x256xf32>
    %60 = tpu.matmul %59, %0, %cst_47 {dimension_numbers = #tpu.dot_dimension_numbers<[1], [0], [0], [1], [0, 0, 1, 1], [], []>} : vector<8x32xf32>, vector<32x256xf32>, vector<8x256xf32> -> vector<8x256xf32>
    %61 = vector.broadcast %1 : vector<1x256xf32> to vector<8x256xf32>
    %62 = arith.addf %60, %61 : vector<8x256xf32>
    %c7_48 = arith.constant 7 : index
    %c0_49 = arith.constant 0 : index
    %c0_50 = arith.constant 0 : index
    %63 = vector.load %arg8[%c7_48, %c0_49, %c0_50] : memref<8x8x256xf32, #tpu.memory_space<vmem>>, vector<1x8x256xf32>
    %64 = vector.shape_cast %63 : vector<1x8x256xf32> to vector<8x256xf32>
    %65 = vector.shape_cast %62 : vector<8x256xf32> to vector<1x8x256xf32>
    tpu.vector_store %arg8[%c7_48, %c0_49, %c0_50], %65 {strides = array<i32>} : memref<8x8x256xf32, #tpu.memory_space<vmem>>, vector<1x8x256xf32>,
    %c0_51 = arith.constant 0 : index
    %c0_52 = arith.constant 0 : index
    %66 = vector.load %arg4[%c0_51, %c0_52] : memref<64x256xf32, #tpu.memory_space<vmem>>, vector<64x256xf32>
    %67 = tpu.iota {dimensions = array<i32: 1>} : vector<8x256xi32>
    %c64_i32 = arith.constant 64 : i32
    %c0_i32 = arith.constant 0 : i32
    %68 = arith.cmpi eq, %c64_i32, %c0_i32 : i32
    %c1_i32 = arith.constant 1 : i32
    %69 = arith.select %68, %c1_i32, %c64_i32 : i32
    %70 = vector.broadcast %69 : i32 to vector<8x256xi32>
    %71 = arith.remsi %67, %70 : vector<8x256xi32>
    %c0_i32_53 = arith.constant 0 : i32
    %72 = vector.broadcast %c0_i32_53 : i32 to vector<8x256xi32>
    %73 = arith.cmpi ne, %71, %72 : vector<8x256xi32>
    %c0_i32_54 = arith.constant 0 : i32
    %74 = vector.broadcast %c0_i32_54 : i32 to vector<8x256xi32>
    %75 = arith.cmpi slt, %71, %74 : vector<8x256xi32>
    %c0_i32_55 = arith.constant 0 : i32
    %76 = arith.cmpi slt, %69, %c0_i32_55 : i32
    %77 = vector.broadcast %76 : i1 to vector<8x256xi1>
    %78 = vector.broadcast %77 : vector<8x256xi1> to vector<8x256xi1>
    %79 = arith.xori %75, %78 : vector<8x256xi1>
    %80 = arith.andi %79, %73 : vector<8x256xi1>
    %81 = vector.broadcast %69 : i32 to vector<8x256xi32>
    %82 = arith.addi %71, %81 : vector<8x256xi32>
    %83 = arith.select %80, %82, %71 : vector<8x256xi1>, vector<8x256xi32>
    %c32_i32 = arith.constant 32 : i32
    %84 = vector.broadcast %c32_i32 : i32 to vector<8x256xi32>
    %85 = arith.cmpi slt, %83, %84 : vector<8x256xi32>
    %c128_i32 = arith.constant 128 : i32
    %86 = vector.broadcast %c128_i32 : i32 to vector<8x256xi32>
    %87 = arith.cmpi sge, %67, %86 : vector<8x256xi32>
    %c192_i32 = arith.constant 192 : i32
    %88 = vector.broadcast %c192_i32 : i32 to vector<8x256xi32>
    %89 = arith.cmpi slt, %67, %88 : vector<8x256xi32>
    %90 = arith.andi %87, %89 : vector<8x256xi1>
    %cst_56 = arith.constant 0.000000e+00 : f32
    %91 = vector.broadcast %cst_56 : f32 to vector<8x64xf32>
    %c0_i32_57 = arith.constant 0 : i32
    %92 = arith.index_cast %c0_i32_57 : i32 to index
    %c0_58 = arith.constant 0 : index
    %c0_59 = arith.constant 0 : index
    %93 = vector.load %arg8[%92, %c0_58, %c0_59] : memref<8x8x256xf32, #tpu.memory_space<vmem>>, vector<1x8x256xf32>
    %94 = vector.shape_cast %93 : vector<1x8x256xf32> to vector<8x256xf32>
    %c7_i32 = arith.constant 7 : i32
    %95 = arith.subi %c7_i32, %c0_i32_57 : i32
    %96 = arith.index_cast %95 : i32 to index
    %c0_60 = arith.constant 0 : index
    %c0_61 = arith.constant 0 : index
    %97 = vector.load %arg8[%96, %c0_60, %c0_61] : memref<8x8x256xf32, #tpu.memory_space<vmem>>, vector<1x8x256xf32>
    %98 = vector.shape_cast %97 : vector<1x8x256xf32> to vector<8x256xf32>
    %99 = arith.select %85, %94, %98 : vector<8x256xi1>, vector<8x256xf32>
    %cst_62 = arith.constant dense<0.000000e+00> : vector<8x256xf32>
    %100 = tpu.matmul %91, %66, %cst_62 {dimension_numbers = #tpu.dot_dimension_numbers<[1], [0], [0], [1], [0, 0, 1, 1], [], []>} : vector<8x64xf32>, vector<64x256xf32>, vector<8x256xf32> -> vector<8x256xf32>
    %101 = arith.addf %99, %100 : vector<8x256xf32>
    %102 = math.tanh %101 : vector<8x256xf32>
    %103 = arith.negf %101 : vector<8x256xf32>
    %104 = math.exp %103 : vector<8x256xf32>
    %cst_63 = arith.constant 1.000000e+00 : f32
    %105 = vector.broadcast %cst_63 : f32 to vector<8x256xf32>
    %106 = arith.addf %105, %104 : vector<8x256xf32>
    %107 = arith.divf %105, %106 : vector<8x256xf32>
    %108 = arith.select %90, %102, %107 : vector<8x256xi1>, vector<8x256xf32>
    %109 = vector.extract_strided_slice %108 {offsets = [0, 0], sizes = [8, 64], strides = [1, 1]} : vector<8x256xf32> to vector<8x64xf32>
    %110 = vector.extract_strided_slice %108 {offsets = [0, 64], sizes = [8, 64], strides = [1, 1]} : vector<8x256xf32> to vector<8x64xf32>
    %111 = vector.extract_strided_slice %108 {offsets = [0, 128], sizes = [8, 64], strides = [1, 1]} : vector<8x256xf32> to vector<8x64xf32>
    %112 = vector.extract_strided_slice %108 {offsets = [0, 192], sizes = [8, 64], strides = [1, 1]} : vector<8x256xf32> to vector<8x64xf32>
    %113 = arith.mulf %110, %91 : vector<8x64xf32>
    %114 = arith.mulf %109, %111 : vector<8x64xf32>
    %115 = arith.addf %113, %114 : vector<8x64xf32>
    %116 = math.tanh %115 : vector<8x64xf32>
    %117 = arith.mulf %112, %116 : vector<8x64xf32>
    %c1_i32_64 = arith.constant 1 : i32
    %118 = arith.index_cast %c1_i32_64 : i32 to index
    %c0_65 = arith.constant 0 : index
    %c0_66 = arith.constant 0 : index
    %119 = vector.load %arg8[%118, %c0_65, %c0_66] : memref<8x8x256xf32, #tpu.memory_space<vmem>>, vector<1x8x256xf32>
    %120 = vector.shape_cast %119 : vector<1x8x256xf32> to vector<8x256xf32>
    %c7_i32_67 = arith.constant 7 : i32
    %121 = arith.subi %c7_i32_67, %c1_i32_64 : i32
    %122 = arith.index_cast %121 : i32 to index
    %c0_68 = arith.constant 0 : index
    %c0_69 = arith.constant 0 : index
    %123 = vector.load %arg8[%122, %c0_68, %c0_69] : memref<8x8x256xf32, #tpu.memory_space<vmem>>, vector<1x8x256xf32>
    %124 = vector.shape_cast %123 : vector<1x8x256xf32> to vector<8x256xf32>
    %125 = arith.select %85, %120, %124 : vector<8x256xi1>, vector<8x256xf32>
    %cst_70 = arith.constant dense<0.000000e+00> : vector<8x256xf32>
    %126 = tpu.matmul %117, %66, %cst_70 {dimension_numbers = #tpu.dot_dimension_numbers<[1], [0], [0], [1], [0, 0, 1, 1], [], []>} : vector<8x64xf32>, vector<64x256xf32>, vector<8x256xf32> -> vector<8x256xf32>
    %127 = arith.addf %125, %126 : vector<8x256xf32>
    %128 = math.tanh %127 : vector<8x256xf32>
    %129 = arith.negf %127 : vector<8x256xf32>
    %130 = math.exp %129 : vector<8x256xf32>
    %cst_71 = arith.constant 1.000000e+00 : f32
    %131 = vector.broadcast %cst_71 : f32 to vector<8x256xf32>
    %132 = arith.addf %131, %130 : vector<8x256xf32>
    %133 = arith.divf %131, %132 : vector<8x256xf32>
    %134 = arith.select %90, %128, %133 : vector<8x256xi1>, vector<8x256xf32>
    %135 = vector.extract_strided_slice %134 {offsets = [0, 0], sizes = [8, 64], strides = [1, 1]} : vector<8x256xf32> to vector<8x64xf32>
    %136 = vector.extract_strided_slice %134 {offsets = [0, 64], sizes = [8, 64], strides = [1, 1]} : vector<8x256xf32> to vector<8x64xf32>
    %137 = vector.extract_strided_slice %134 {offsets = [0, 128], sizes = [8, 64], strides = [1, 1]} : vector<8x256xf32> to vector<8x64xf32>
    %138 = vector.extract_strided_slice %134 {offsets = [0, 192], sizes = [8, 64], strides = [1, 1]} : vector<8x256xf32> to vector<8x64xf32>
    %139 = arith.mulf %136, %115 : vector<8x64xf32>
    %140 = arith.mulf %135, %137 : vector<8x64xf32>
    %141 = arith.addf %139, %140 : vector<8x64xf32>
    %142 = math.tanh %141 : vector<8x64xf32>
    %143 = arith.mulf %138, %142 : vector<8x64xf32>
    %c2_i32 = arith.constant 2 : i32
    %144 = arith.index_cast %c2_i32 : i32 to index
    %c0_72 = arith.constant 0 : index
    %c0_73 = arith.constant 0 : index
    %145 = vector.load %arg8[%144, %c0_72, %c0_73] : memref<8x8x256xf32, #tpu.memory_space<vmem>>, vector<1x8x256xf32>
    %146 = vector.shape_cast %145 : vector<1x8x256xf32> to vector<8x256xf32>
    %c7_i32_74 = arith.constant 7 : i32
    %147 = arith.subi %c7_i32_74, %c2_i32 : i32
    %148 = arith.index_cast %147 : i32 to index
    %c0_75 = arith.constant 0 : index
    %c0_76 = arith.constant 0 : index
    %149 = vector.load %arg8[%148, %c0_75, %c0_76] : memref<8x8x256xf32, #tpu.memory_space<vmem>>, vector<1x8x256xf32>
    %150 = vector.shape_cast %149 : vector<1x8x256xf32> to vector<8x256xf32>
    %151 = arith.select %85, %146, %150 : vector<8x256xi1>, vector<8x256xf32>
    %cst_77 = arith.constant dense<0.000000e+00> : vector<8x256xf32>
    %152 = tpu.matmul %143, %66, %cst_77 {dimension_numbers = #tpu.dot_dimension_numbers<[1], [0], [0], [1], [0, 0, 1, 1], [], []>} : vector<8x64xf32>, vector<64x256xf32>, vector<8x256xf32> -> vector<8x256xf32>
    %153 = arith.addf %151, %152 : vector<8x256xf32>
    %154 = math.tanh %153 : vector<8x256xf32>
    %155 = arith.negf %153 : vector<8x256xf32>
    %156 = math.exp %155 : vector<8x256xf32>
    %cst_78 = arith.constant 1.000000e+00 : f32
    %157 = vector.broadcast %cst_78 : f32 to vector<8x256xf32>
    %158 = arith.addf %157, %156 : vector<8x256xf32>
    %159 = arith.divf %157, %158 : vector<8x256xf32>
    %160 = arith.select %90, %154, %159 : vector<8x256xi1>, vector<8x256xf32>
    %161 = vector.extract_strided_slice %160 {offsets = [0, 0], sizes = [8, 64], strides = [1, 1]} : vector<8x256xf32> to vector<8x64xf32>
    %162 = vector.extract_strided_slice %160 {offsets = [0, 64], sizes = [8, 64], strides = [1, 1]} : vector<8x256xf32> to vector<8x64xf32>
    %163 = vector.extract_strided_slice %160 {offsets = [0, 128], sizes = [8, 64], strides = [1, 1]} : vector<8x256xf32> to vector<8x64xf32>
    %164 = vector.extract_strided_slice %160 {offsets = [0, 192], sizes = [8, 64], strides = [1, 1]} : vector<8x256xf32> to vector<8x64xf32>
    %165 = arith.mulf %162, %141 : vector<8x64xf32>
    %166 = arith.mulf %161, %163 : vector<8x64xf32>
    %167 = arith.addf %165, %166 : vector<8x64xf32>
    %168 = math.tanh %167 : vector<8x64xf32>
    %169 = arith.mulf %164, %168 : vector<8x64xf32>
    %c3_i32 = arith.constant 3 : i32
    %170 = arith.index_cast %c3_i32 : i32 to index
    %c0_79 = arith.constant 0 : index
    %c0_80 = arith.constant 0 : index
    %171 = vector.load %arg8[%170, %c0_79, %c0_80] : memref<8x8x256xf32, #tpu.memory_space<vmem>>, vector<1x8x256xf32>
    %172 = vector.shape_cast %171 : vector<1x8x256xf32> to vector<8x256xf32>
    %c7_i32_81 = arith.constant 7 : i32
    %173 = arith.subi %c7_i32_81, %c3_i32 : i32
    %174 = arith.index_cast %173 : i32 to index
    %c0_82 = arith.constant 0 : index
    %c0_83 = arith.constant 0 : index
    %175 = vector.load %arg8[%174, %c0_82, %c0_83] : memref<8x8x256xf32, #tpu.memory_space<vmem>>, vector<1x8x256xf32>
    %176 = vector.shape_cast %175 : vector<1x8x256xf32> to vector<8x256xf32>
    %177 = arith.select %85, %172, %176 : vector<8x256xi1>, vector<8x256xf32>
    %cst_84 = arith.constant dense<0.000000e+00> : vector<8x256xf32>
    %178 = tpu.matmul %169, %66, %cst_84 {dimension_numbers = #tpu.dot_dimension_numbers<[1], [0], [0], [1], [0, 0, 1, 1], [], []>} : vector<8x64xf32>, vector<64x256xf32>, vector<8x256xf32> -> vector<8x256xf32>
    %179 = arith.addf %177, %178 : vector<8x256xf32>
    %180 = math.tanh %179 : vector<8x256xf32>
    %181 = arith.negf %179 : vector<8x256xf32>
    %182 = math.exp %181 : vector<8x256xf32>
    %cst_85 = arith.constant 1.000000e+00 : f32
    %183 = vector.broadcast %cst_85 : f32 to vector<8x256xf32>
    %184 = arith.addf %183, %182 : vector<8x256xf32>
    %185 = arith.divf %183, %184 : vector<8x256xf32>
    %186 = arith.select %90, %180, %185 : vector<8x256xi1>, vector<8x256xf32>
    %187 = vector.extract_strided_slice %186 {offsets = [0, 0], sizes = [8, 64], strides = [1, 1]} : vector<8x256xf32> to vector<8x64xf32>
    %188 = vector.extract_strided_slice %186 {offsets = [0, 64], sizes = [8, 64], strides = [1, 1]} : vector<8x256xf32> to vector<8x64xf32>
    %189 = vector.extract_strided_slice %186 {offsets = [0, 128], sizes = [8, 64], strides = [1, 1]} : vector<8x256xf32> to vector<8x64xf32>
    %190 = vector.extract_strided_slice %186 {offsets = [0, 192], sizes = [8, 64], strides = [1, 1]} : vector<8x256xf32> to vector<8x64xf32>
    %191 = arith.mulf %188, %167 : vector<8x64xf32>
    %192 = arith.mulf %187, %189 : vector<8x64xf32>
    %193 = arith.addf %191, %192 : vector<8x64xf32>
    %194 = math.tanh %193 : vector<8x64xf32>
    %195 = arith.mulf %190, %194 : vector<8x64xf32>
    %c4_i32 = arith.constant 4 : i32
    %196 = arith.index_cast %c4_i32 : i32 to index
    %c0_86 = arith.constant 0 : index
    %c0_87 = arith.constant 0 : index
    %197 = vector.load %arg8[%196, %c0_86, %c0_87] : memref<8x8x256xf32, #tpu.memory_space<vmem>>, vector<1x8x256xf32>
    %198 = vector.shape_cast %197 : vector<1x8x256xf32> to vector<8x256xf32>
    %c7_i32_88 = arith.constant 7 : i32
    %199 = arith.subi %c7_i32_88, %c4_i32 : i32
    %200 = arith.index_cast %199 : i32 to index
    %c0_89 = arith.constant 0 : index
    %c0_90 = arith.constant 0 : index
    %201 = vector.load %arg8[%200, %c0_89, %c0_90] : memref<8x8x256xf32, #tpu.memory_space<vmem>>, vector<1x8x256xf32>
    %202 = vector.shape_cast %201 : vector<1x8x256xf32> to vector<8x256xf32>
    %203 = arith.select %85, %198, %202 : vector<8x256xi1>, vector<8x256xf32>
    %cst_91 = arith.constant dense<0.000000e+00> : vector<8x256xf32>
    %204 = tpu.matmul %195, %66, %cst_91 {dimension_numbers = #tpu.dot_dimension_numbers<[1], [0], [0], [1], [0, 0, 1, 1], [], []>} : vector<8x64xf32>, vector<64x256xf32>, vector<8x256xf32> -> vector<8x256xf32>
    %205 = arith.addf %203, %204 : vector<8x256xf32>
    %206 = math.tanh %205 : vector<8x256xf32>
    %207 = arith.negf %205 : vector<8x256xf32>
    %208 = math.exp %207 : vector<8x256xf32>
    %cst_92 = arith.constant 1.000000e+00 : f32
    %209 = vector.broadcast %cst_92 : f32 to vector<8x256xf32>
    %210 = arith.addf %209, %208 : vector<8x256xf32>
    %211 = arith.divf %209, %210 : vector<8x256xf32>
    %212 = arith.select %90, %206, %211 : vector<8x256xi1>, vector<8x256xf32>
    %213 = vector.extract_strided_slice %212 {offsets = [0, 0], sizes = [8, 64], strides = [1, 1]} : vector<8x256xf32> to vector<8x64xf32>
    %214 = vector.extract_strided_slice %212 {offsets = [0, 64], sizes = [8, 64], strides = [1, 1]} : vector<8x256xf32> to vector<8x64xf32>
    %215 = vector.extract_strided_slice %212 {offsets = [0, 128], sizes = [8, 64], strides = [1, 1]} : vector<8x256xf32> to vector<8x64xf32>
    %216 = vector.extract_strided_slice %212 {offsets = [0, 192], sizes = [8, 64], strides = [1, 1]} : vector<8x256xf32> to vector<8x64xf32>
    %217 = arith.mulf %214, %193 : vector<8x64xf32>
    %218 = arith.mulf %213, %215 : vector<8x64xf32>
    %219 = arith.addf %217, %218 : vector<8x64xf32>
    %220 = math.tanh %219 : vector<8x64xf32>
    %221 = arith.mulf %216, %220 : vector<8x64xf32>
    %c5_i32 = arith.constant 5 : i32
    %222 = arith.index_cast %c5_i32 : i32 to index
    %c0_93 = arith.constant 0 : index
    %c0_94 = arith.constant 0 : index
    %223 = vector.load %arg8[%222, %c0_93, %c0_94] : memref<8x8x256xf32, #tpu.memory_space<vmem>>, vector<1x8x256xf32>
    %224 = vector.shape_cast %223 : vector<1x8x256xf32> to vector<8x256xf32>
    %c7_i32_95 = arith.constant 7 : i32
    %225 = arith.subi %c7_i32_95, %c5_i32 : i32
    %226 = arith.index_cast %225 : i32 to index
    %c0_96 = arith.constant 0 : index
    %c0_97 = arith.constant 0 : index
    %227 = vector.load %arg8[%226, %c0_96, %c0_97] : memref<8x8x256xf32, #tpu.memory_space<vmem>>, vector<1x8x256xf32>
    %228 = vector.shape_cast %227 : vector<1x8x256xf32> to vector<8x256xf32>
    %229 = arith.select %85, %224, %228 : vector<8x256xi1>, vector<8x256xf32>
    %cst_98 = arith.constant dense<0.000000e+00> : vector<8x256xf32>
    %230 = tpu.matmul %221, %66, %cst_98 {dimension_numbers = #tpu.dot_dimension_numbers<[1], [0], [0], [1], [0, 0, 1, 1], [], []>} : vector<8x64xf32>, vector<64x256xf32>, vector<8x256xf32> -> vector<8x256xf32>
    %231 = arith.addf %229, %230 : vector<8x256xf32>
    %232 = math.tanh %231 : vector<8x256xf32>
    %233 = arith.negf %231 : vector<8x256xf32>
    %234 = math.exp %233 : vector<8x256xf32>
    %cst_99 = arith.constant 1.000000e+00 : f32
    %235 = vector.broadcast %cst_99 : f32 to vector<8x256xf32>
    %236 = arith.addf %235, %234 : vector<8x256xf32>
    %237 = arith.divf %235, %236 : vector<8x256xf32>
    %238 = arith.select %90, %232, %237 : vector<8x256xi1>, vector<8x256xf32>
    %239 = vector.extract_strided_slice %238 {offsets = [0, 0], sizes = [8, 64], strides = [1, 1]} : vector<8x256xf32> to vector<8x64xf32>
    %240 = vector.extract_strided_slice %238 {offsets = [0, 64], sizes = [8, 64], strides = [1, 1]} : vector<8x256xf32> to vector<8x64xf32>
    %241 = vector.extract_strided_slice %238 {offsets = [0, 128], sizes = [8, 64], strides = [1, 1]} : vector<8x256xf32> to vector<8x64xf32>
    %242 = vector.extract_strided_slice %238 {offsets = [0, 192], sizes = [8, 64], strides = [1, 1]} : vector<8x256xf32> to vector<8x64xf32>
    %243 = arith.mulf %240, %219 : vector<8x64xf32>
    %244 = arith.mulf %239, %241 : vector<8x64xf32>
    %245 = arith.addf %243, %244 : vector<8x64xf32>
    %246 = math.tanh %245 : vector<8x64xf32>
    %247 = arith.mulf %242, %246 : vector<8x64xf32>
    %c6_i32 = arith.constant 6 : i32
    %248 = arith.index_cast %c6_i32 : i32 to index
    %c0_100 = arith.constant 0 : index
    %c0_101 = arith.constant 0 : index
    %249 = vector.load %arg8[%248, %c0_100, %c0_101] : memref<8x8x256xf32, #tpu.memory_space<vmem>>, vector<1x8x256xf32>
    %250 = vector.shape_cast %249 : vector<1x8x256xf32> to vector<8x256xf32>
    %c7_i32_102 = arith.constant 7 : i32
    %251 = arith.subi %c7_i32_102, %c6_i32 : i32
    %252 = arith.index_cast %251 : i32 to index
    %c0_103 = arith.constant 0 : index
    %c0_104 = arith.constant 0 : index
    %253 = vector.load %arg8[%252, %c0_103, %c0_104] : memref<8x8x256xf32, #tpu.memory_space<vmem>>, vector<1x8x256xf32>
    %254 = vector.shape_cast %253 : vector<1x8x256xf32> to vector<8x256xf32>
    %255 = arith.select %85, %250, %254 : vector<8x256xi1>, vector<8x256xf32>
    %cst_105 = arith.constant dense<0.000000e+00> : vector<8x256xf32>
    %256 = tpu.matmul %247, %66, %cst_105 {dimension_numbers = #tpu.dot_dimension_numbers<[1], [0], [0], [1], [0, 0, 1, 1], [], []>} : vector<8x64xf32>, vector<64x256xf32>, vector<8x256xf32> -> vector<8x256xf32>
    %257 = arith.addf %255, %256 : vector<8x256xf32>
    %258 = math.tanh %257 : vector<8x256xf32>
    %259 = arith.negf %257 : vector<8x256xf32>
    %260 = math.exp %259 : vector<8x256xf32>
    %cst_106 = arith.constant 1.000000e+00 : f32
    %261 = vector.broadcast %cst_106 : f32 to vector<8x256xf32>
    %262 = arith.addf %261, %260 : vector<8x256xf32>
    %263 = arith.divf %261, %262 : vector<8x256xf32>
    %264 = arith.select %90, %258, %263 : vector<8x256xi1>, vector<8x256xf32>
    %265 = vector.extract_strided_slice %264 {offsets = [0, 0], sizes = [8, 64], strides = [1, 1]} : vector<8x256xf32> to vector<8x64xf32>
    %266 = vector.extract_strided_slice %264 {offsets = [0, 64], sizes = [8, 64], strides = [1, 1]} : vector<8x256xf32> to vector<8x64xf32>
    %267 = vector.extract_strided_slice %264 {offsets = [0, 128], sizes = [8, 64], strides = [1, 1]} : vector<8x256xf32> to vector<8x64xf32>
    %268 = vector.extract_strided_slice %264 {offsets = [0, 192], sizes = [8, 64], strides = [1, 1]} : vector<8x256xf32> to vector<8x64xf32>
    %269 = arith.mulf %266, %245 : vector<8x64xf32>
    %270 = arith.mulf %265, %267 : vector<8x64xf32>
    %271 = arith.addf %269, %270 : vector<8x64xf32>
    %272 = math.tanh %271 : vector<8x64xf32>
    %273 = arith.mulf %268, %272 : vector<8x64xf32>
    %c7_i32_107 = arith.constant 7 : i32
    %274 = arith.index_cast %c7_i32_107 : i32 to index
    %c0_108 = arith.constant 0 : index
    %c0_109 = arith.constant 0 : index
    %275 = vector.load %arg8[%274, %c0_108, %c0_109] : memref<8x8x256xf32, #tpu.memory_space<vmem>>, vector<1x8x256xf32>
    %276 = vector.shape_cast %275 : vector<1x8x256xf32> to vector<8x256xf32>
    %c7_i32_110 = arith.constant 7 : i32
    %277 = arith.subi %c7_i32_110, %c7_i32_107 : i32
    %278 = arith.index_cast %277 : i32 to index
    %c0_111 = arith.constant 0 : index
    %c0_112 = arith.constant 0 : index
    %279 = vector.load %arg8[%278, %c0_111, %c0_112] : memref<8x8x256xf32, #tpu.memory_space<vmem>>, vector<1x8x256xf32>
    %280 = vector.shape_cast %279 : vector<1x8x256xf32> to vector<8x256xf32>
    %281 = arith.select %85, %276, %280 : vector<8x256xi1>, vector<8x256xf32>
    %cst_113 = arith.constant dense<0.000000e+00> : vector<8x256xf32>
    %282 = tpu.matmul %273, %66, %cst_113 {dimension_numbers = #tpu.dot_dimension_numbers<[1], [0], [0], [1], [0, 0, 1, 1], [], []>} : vector<8x64xf32>, vector<64x256xf32>, vector<8x256xf32> -> vector<8x256xf32>
    %283 = arith.addf %281, %282 : vector<8x256xf32>
    %284 = math.tanh %283 : vector<8x256xf32>
    %285 = arith.negf %283 : vector<8x256xf32>
    %286 = math.exp %285 : vector<8x256xf32>
    %cst_114 = arith.constant 1.000000e+00 : f32
    %287 = vector.broadcast %cst_114 : f32 to vector<8x256xf32>
    %288 = arith.addf %287, %286 : vector<8x256xf32>
    %289 = arith.divf %287, %288 : vector<8x256xf32>
    %290 = arith.select %90, %284, %289 : vector<8x256xi1>, vector<8x256xf32>
    %291 = vector.extract_strided_slice %290 {offsets = [0, 0], sizes = [8, 64], strides = [1, 1]} : vector<8x256xf32> to vector<8x64xf32>
    %292 = vector.extract_strided_slice %290 {offsets = [0, 64], sizes = [8, 64], strides = [1, 1]} : vector<8x256xf32> to vector<8x64xf32>
    %293 = vector.extract_strided_slice %290 {offsets = [0, 128], sizes = [8, 64], strides = [1, 1]} : vector<8x256xf32> to vector<8x64xf32>
    %294 = vector.extract_strided_slice %290 {offsets = [0, 192], sizes = [8, 64], strides = [1, 1]} : vector<8x256xf32> to vector<8x64xf32>
    %295 = arith.mulf %292, %271 : vector<8x64xf32>
    %296 = arith.mulf %291, %293 : vector<8x64xf32>
    %297 = arith.addf %295, %296 : vector<8x64xf32>
    %298 = math.tanh %297 : vector<8x64xf32>
    %299 = arith.mulf %294, %298 : vector<8x64xf32>
    %c8_i32 = arith.constant 8 : i32
    %c0_115 = arith.constant 0 : index
    %c0_116 = arith.constant 0 : index
    %300 = vector.load %arg5[%c0_115, %c0_116] : memref<64x16xf32, #tpu.memory_space<vmem>>, vector<64x16xf32>
    %cst_117 = arith.constant dense<0.000000e+00> : vector<8x16xf32>
    %301 = tpu.matmul %299, %300, %cst_117 {dimension_numbers = #tpu.dot_dimension_numbers<[1], [0], [0], [1], [0, 0, 1, 1], [], []>} : vector<8x64xf32>, vector<64x16xf32>, vector<8x16xf32> -> vector<8x16xf32>
    %c0_118 = arith.constant 0 : index
    %c0_119 = arith.constant 0 : index
    %302 = vector.load %arg6[%c0_118, %c0_119] : memref<1x16xf32, #tpu.memory_space<vmem>>, vector<1x16xf32>
    %303 = vector.broadcast %302 : vector<1x16xf32> to vector<8x16xf32>
    %304 = arith.addf %301, %303 : vector<8x16xf32>
    %305 = arith.negf %304 : vector<8x16xf32>
    %306 = math.exp %305 : vector<8x16xf32>
    %cst_120 = arith.constant 1.000000e+00 : f32
    %307 = vector.broadcast %cst_120 : f32 to vector<8x16xf32>
    %308 = arith.addf %307, %306 : vector<8x16xf32>
    %309 = arith.divf %307, %308 : vector<8x16xf32>
    %c0_121 = arith.constant 0 : index
    %c0_122 = arith.constant 0 : index
    %310 = vector.load %arg7[%c0_121, %c0_122] : memref<8x16xf32, #tpu.memory_space<vmem>>, vector<8x16xf32>
    tpu.vector_store %arg7[%c0_121, %c0_122], %309 {strides = array<i32>} : memref<8x16xf32, #tpu.memory_space<vmem>>, vector<8x16xf32>,
    return
  }
  func.func @transform_0(%arg0: i32) -> (i32, i32, i32) {
    %c0_i32 = arith.constant 0 : i32
    %c0_i32_0 = arith.constant 0 : i32
    %c0_i32_1 = arith.constant 0 : i32
    return %c0_i32, %arg0, %c0_i32_0 : i32, i32, i32
  }
  func.func @transform_1(%arg0: i32) -> (i32, i32) {
    %c0_i32 = arith.constant 0 : i32
    %c0_i32_0 = arith.constant 0 : i32
    %c0_i32_1 = arith.constant 0 : i32
    return %c0_i32, %c0_i32_0 : i32, i32
  }
  func.func @transform_2(%arg0: i32) -> (i32, i32) {
    %c0_i32 = arith.constant 0 : i32
    %c0_i32_0 = arith.constant 0 : i32
    %c0_i32_1 = arith.constant 0 : i32
    return %c0_i32, %c0_i32_0 : i32, i32
  }
  func.func @transform_3(%arg0: i32) -> (i32, i32) {
    %c0_i32 = arith.constant 0 : i32
    %c0_i32_0 = arith.constant 0 : i32
    %c0_i32_1 = arith.constant 0 : i32
    return %c0_i32, %c0_i32_0 : i32, i32
  }
  func.func @transform_4(%arg0: i32) -> (i32, i32) {
    %c0_i32 = arith.constant 0 : i32
    %c0_i32_0 = arith.constant 0 : i32
    %c0_i32_1 = arith.constant 0 : i32
    return %c0_i32, %c0_i32_0 : i32, i32
  }
  func.func @transform_5(%arg0: i32) -> (i32, i32) {
    %c0_i32 = arith.constant 0 : i32
    %c0_i32_0 = arith.constant 0 : i32
    %c0_i32_1 = arith.constant 0 : i32
    return %c0_i32, %c0_i32_0 : i32, i32
  }
  func.func @transform_6(%arg0: i32) -> (i32, i32) {
    %c0_i32 = arith.constant 0 : i32
    %c0_i32_0 = arith.constant 0 : i32
    return %arg0, %c0_i32 : i32, i32
  }
}

</mosaic_0001>

<llo_original>
// kernel: tpu_custom_call.1
$region0: #{tpu_custom_call.1}
  #allocation0 [shape = 'u32[]', space=smem, size = 0x4, offset = 0x4, fixed_abs, tag = 'smem constant byte address 0x4 - core index']
  #allocation1 [shape = 'u32[144,128]{1,0:T(1,128)}', space=vmem, size = 0x12000, scoped, tag = 'internal scratch']
  #allocation2 [shape = 'f32[8,8,256]{2,1,0:T(8,128)}', space=vmem, size = 0x10000, scoped, tag = 'scratch operand']
  %s0 = inlined_call_operand.vmem [shape: f32[8,8,32], index: 0, kind: input, shape index: {}]
  %s1 = inlined_call_operand.hbm [shape: f32[32,256], index: 1, kind: input, shape index: {}]
  %s2 = inlined_call_operand.vmem [shape: f32[1,256], index: 2, kind: input, shape index: {}]
  %s3 = inlined_call_operand.hbm [shape: f32[64,256], index: 3, kind: input, shape index: {}]
  %s4 = inlined_call_operand.vmem [shape: f32[64,16], index: 4, kind: input, shape index: {}]
  %s5 = inlined_call_operand.vmem [shape: f32[1,16], index: 5, kind: input, shape index: {}]
  %s6 = inlined_call_operand.hbm [shape: f32[8,16], index: 6, kind: output, shape index: {}]
  %s7 = sld [smem:[#allocation0]]
  $region42: #{tpu_custom_call.1} parent=0
    _
  %s9 = ssub.s32 1, %s7
  %s10 = scalar_select 0, %s9, %s7
  $region1: #{tpu_custom_call.1} parent=0
    #allocation3 [shape = 'u8[32768]{0}', space=vmem, size = 0x8000, scoped, tag = 'input window, operand 1, single buffered']
    #allocation4 [shape = 's32[1]{0}', space=sflag, size = 0x4, scoped, tag = 'scoped memory for tpu_custom_call.1']
    #allocation5 [shape = 's32[1]{0}', space=sflag, size = 0x4, scoped, tag = 'scoped memory for tpu_custom_call.1']
    #allocation6 [shape = 'u8[65536]{0}', space=vmem, size = 0x10000, scoped, tag = 'input window, operand 3, single buffered']
    #allocation7 [shape = 's32[1]{0}', space=sflag, size = 0x4, scoped, tag = 'scoped memory for tpu_custom_call.1']
    #allocation8 [shape = 'u8[4096]{0}', space=vmem, size = 0x1000, scoped, tag = 'output window, operand 0, single buffered']
    %11 = vsyncpa [#allocation4], 0
    %12 = vsyncpa [#allocation7], 0
    %13 = vsyncpa [#allocation5], 0
    // Predicated region
    $region2: #{tpu_custom_call.1} parent=1 // pred_check
      _
    $region3: #{tpu_custom_call.1} parent=1 // pred_check_branch
      %15 = sbr.rel (0) target = $region5
    $region4: #{tpu_custom_call.1} parent=1 // pred_region
      _
    $region5: #{tpu_custom_call.1} parent=1 // pred_fallthru
      _
    // Predicated region
    $region6: #{tpu_custom_call.1} parent=1 // pred_check
      _
    $region7: #{tpu_custom_call.1} parent=1 // pred_check_branch
      %17 = sbr.rel (0) target = $region9
    $region8: #{tpu_custom_call.1} parent=1 // pred_region
      %s19 = ssub.s32 1024, 1024
      %20 = vsyncadd [#allocation4], %s19
      %s21 = sshll.u32 [#allocation3], 4
      %s22 = int_to_ptr.vmem [resolvable:$true] %s21
      %27 = dma.hbm_to_vmem [thread:$0]  %s1, 1024, %s22, [#allocation4], 256, 256, 16
    $region9: #{tpu_custom_call.1} parent=1 // pred_fallthru
      _
    // Predicated region
    $region10: #{tpu_custom_call.1} parent=1 // pred_check
      _
    $region11: #{tpu_custom_call.1} parent=1 // pred_check_branch
      %29 = sbr.rel (0) target = $region13
    $region12: #{tpu_custom_call.1} parent=1 // pred_region
      _
    $region13: #{tpu_custom_call.1} parent=1 // pred_fallthru
      _
    // Predicated region
    $region14: #{tpu_custom_call.1} parent=1 // pred_check
      _
    $region15: #{tpu_custom_call.1} parent=1 // pred_check_branch
      %31 = sbr.rel (0) target = $region17
    $region16: #{tpu_custom_call.1} parent=1 // pred_region
      %s33 = ssub.s32 2048, 2048
      %34 = vsyncadd [#allocation7], %s33
      %s35 = sshll.u32 [#allocation6], 4
      %s36 = int_to_ptr.vmem [resolvable:$true] %s35
      %41 = dma.hbm_to_vmem [thread:$0]  %s3, 2048, %s36, [#allocation7], 256, 256, 16
    $region17: #{tpu_custom_call.1} parent=1 // pred_fallthru
      _
    // Predicated region
    $region18: #{tpu_custom_call.1} parent=1 // pred_check
      _
    $region19: #{tpu_custom_call.1} parent=1 // pred_check_branch
      %43 = sbr.rel (0) target = $region21
    $region20: #{tpu_custom_call.1} parent=1 // pred_region
      _
    $region21: #{tpu_custom_call.1} parent=1 // pred_fallthru
      _
    // Predicated region
    $region22: #{tpu_custom_call.1} parent=1 // pred_check
      _
    $region23: #{tpu_custom_call.1} parent=1 // pred_check_branch
      %45 = sbr.rel (0) target = $region25
    $region24: #{tpu_custom_call.1} parent=1 // pred_region
      _
    $region25: #{tpu_custom_call.1} parent=1 // pred_fallthru
      _
    // Predicated region
    $region26: #{tpu_custom_call.1} parent=1 // pred_check
      _
    $region27: #{tpu_custom_call.1} parent=1 // pred_check_branch
      %47 = sbr.rel (0) target = $region29
    $region28: #{tpu_custom_call.1} parent=1 // pred_region
      %48 = dma.done [#allocation4], 1024
    $region29: #{tpu_custom_call.1} parent=1 // pred_fallthru
      _
    // Predicated region
    $region30: #{tpu_custom_call.1} parent=1 // pred_check
      _
    $region31: #{tpu_custom_call.1} parent=1 // pred_check_branch
      %50 = sbr.rel (0) target = $region33
    $region32: #{tpu_custom_call.1} parent=1 // pred_region
      %51 = dma.done [#allocation7], 2048
    $region33: #{tpu_custom_call.1} parent=1 // pred_fallthru
      _
    %v52 = vld [vmem:[#allocation3] sm:$0xff]
    %v53 = vld [vmem:[#allocation3 + $0x8] sm:$0xff]
    %v54 = vld [vmem:[#allocation3 + $0x10] sm:$0xff]
    %v55 = vld [vmem:[#allocation3 + $0x18] sm:$0xff]
    %v56 = vld [vmem:[#allocation3 + $0x20] sm:$0xff]
    %v57 = vld [vmem:[#allocation3 + $0x28] sm:$0xff]
    %v58 = vld [vmem:[#allocation3 + $0x30] sm:$0xff]
    %v59 = vld [vmem:[#allocation3 + $0x38] sm:$0xff]
    %v60 = vld [vmem:[%s2] sm:$0x3]
    %v61 = vld [vmem:[%s0] sm:$0xff]
    %v63 = vlaneseq
    %v64 = vshrl.u32 %v63, 7
    %v65 = vsub.s32 0, %v64
    %v66 = vrot.slane %v60, %v65
    %v67 = vlaneseq
    %v68 = vshrl.u32 %v67, 7
    %v69 = vsub.s32 1, %v68
    %v70 = vrot.slane %v60, %v69
    %vm73 = vcmask 261120
    %v75 = vsel %vm73, %v61, 0
    %77 = vmatprep.subr.mxu0 0.0
    %78 = vmatpush1.msra.mxu0 0.0
    %79 = vmatprep.subr.mxu0 0.0
    %80 = vmatpush1.msra.mxu0 0.0
    %81 = vmatprep.subr.mxu0 0.0
    %82 = vmatpush1.msra.mxu0 0.0
    %83 = vmatprep.subr.mxu0 0.0
    %84 = vmatpush1.msra.mxu0 0.0
    %85 = vmatprep.subr.mxu0 0.0
    %86 = vmatpush1.msra.mxu0 0.0
    %87 = vmatprep.subr.mxu0 0.0
    %88 = vmatpush1.msra.mxu0 0.0
    %89 = vmatprep.subr.mxu0 0.0
    %90 = vmatpush1.msra.mxu0 0.0
    %91 = vmatprep.subr.mxu0 0.0
    %92 = vmatpush1.msra.mxu0 0.0
    %93 = vmatprep.subr.mxu0 0.0
    %94 = vmatpush1.msra.mxu0 0.0
    %95 = vmatprep.subr.mxu0 0.0
    %96 = vmatpush1.msra.mxu0 0.0
    %97 = vmatprep.subr.mxu0 0.0
    %98 = vmatpush1.msra.mxu0 0.0
    %99 = vmatprep.subr.mxu0 0.0
    %100 = vmatpush1.msra.mxu0 0.0
    %101 = vmatprep.subr.mxu0 %v59
    %102 = vmatpush1.msra.mxu0 %v58
    %103 = vmatprep.subr.mxu0 %v57
    %104 = vmatpush1.msra.mxu0 %v56
    %105 = vmatprep.subr.mxu0 %v55
    %106 = vmatpush1.msra.mxu0 %v54
    %107 = vmatprep.subr.mxu0 %v53
    %108 = vmatpush1.msra.mxu0 %v52
    %109 = vmatprep.subr.mxu0 0.0
    %110 = vmatpush2.msra.mxu0 0.0
    %111 = vmatprep.subr.mxu0 0.0
    %112 = vmatpush2.msra.mxu0 0.0
    %113 = vmatprep.subr.mxu0 0.0
    %114 = vmatpush2.msra.mxu0 0.0
    %115 = vmatprep.subr.mxu0 0.0
    %116 = vmatpush2.msra.mxu0 0.0
    %117 = vmatprep.subr.mxu0 0.0
    %118 = vmatpush2.msra.mxu0 0.0
    %119 = vmatprep.subr.mxu0 0.0
    %120 = vmatpush2.msra.mxu0 0.0
    %121 = vmatprep.subr.mxu0 0.0
    %122 = vmatpush2.msra.mxu0 0.0
    %123 = vmatprep.subr.mxu0 0.0
    %124 = vmatpush2.msra.mxu0 0.0
    %125 = vmatprep.subr.mxu0 0.0
    %126 = vmatpush2.msra.mxu0 0.0
    %127 = vmatprep.subr.mxu0 0.0
    %128 = vmatpush2.msra.mxu0 0.0
    %129 = vmatprep.subr.mxu0 0.0
    %130 = vmatpush2.msra.mxu0 0.0
    %131 = vmatprep.subr.mxu0 0.0
    %132 = vmatpush2.msra.mxu0 0.0
    %133 = vmatprep.subr.mxu0 0.0
    %134 = vmatpush2.msra.mxu0 0.0
    %135 = vmatprep.subr.mxu0 0.0
    %136 = vmatpush2.msra.mxu0 0.0
    %137 = vmatprep.subr.mxu0 0.0
    %138 = vmatpush2.msra.mxu0 0.0
    %139 = vmatprep.subr.mxu0 0.0
    %140 = vmatpush2.msra.mxu0 0.0
    %141 = vmatprep.mubr.f32.mxu0 0.0
    %142 = vmatmul.mubr.f32.gmra.mxu0 %v75
    %v143 = vpop.f32.mrf.mxu0
    %v144 = vadd.f32 %v66, %v143
    %v145 = vpop.f32.mrf.mxu0
    %v146 = vadd.f32 %v70, %v145
    %147 = vdwg.mxu0
    %148 = vst [vmem:[#allocation2] sm:$0xff] %v144
    %149 = vst [vmem:[#allocation2 + $0x8] sm:$0xff] %v146
    %s150 = scalar_lea.vmem %s0, 8
    %v151 = vld [vmem:[%s150] sm:$0xff]
    %v153 = vsel %vm73, %v151, 0
    %155 = vmatprep.subr.mxu0 0.0
    %156 = vmatpush1.msra.mxu0 0.0
    %157 = vmatprep.subr.mxu0 0.0
    %158 = vmatpush1.msra.mxu0 0.0
    %159 = vmatprep.subr.mxu0 0.0
    %160 = vmatpush1.msra.mxu0 0.0
    %161 = vmatprep.subr.mxu0 0.0
    %162 = vmatpush1.msra.mxu0 0.0
    %163 = vmatprep.subr.mxu0 0.0
    %164 = vmatpush1.msra.mxu0 0.0
    %165 = vmatprep.subr.mxu0 0.0
    %166 = vmatpush1.msra.mxu0 0.0
    %167 = vmatprep.subr.mxu0 0.0
    %168 = vmatpush1.msra.mxu0 0.0
    %169 = vmatprep.subr.mxu0 0.0
    %170 = vmatpush1.msra.mxu0 0.0
    %171 = vmatprep.subr.mxu0 0.0
    %172 = vmatpush1.msra.mxu0 0.0
    %173 = vmatprep.subr.mxu0 0.0
    %174 = vmatpush1.msra.mxu0 0.0
    %175 = vmatprep.subr.mxu0 0.0
    %176 = vmatpush1.msra.mxu0 0.0
    %177 = vmatprep.subr.mxu0 0.0
    %178 = vmatpush1.msra.mxu0 0.0
    %179 = vmatprep.subr.mxu0 %v59
    %180 = vmatpush1.msra.mxu0 %v58
    %181 = vmatprep.subr.mxu0 %v57
    %182 = vmatpush1.msra.mxu0 %v56
    %183 = vmatprep.subr.mxu0 %v55
    %184 = vmatpush1.msra.mxu0 %v54
    %185 = vmatprep.subr.mxu0 %v53
    %186 = vmatpush1.msra.mxu0 %v52
    %187 = vmatprep.subr.mxu0 0.0
    %188 = vmatpush2.msra.mxu0 0.0
    %189 = vmatprep.subr.mxu0 0.0
    %190 = vmatpush2.msra.mxu0 0.0
    %191 = vmatprep.subr.mxu0 0.0
    %192 = vmatpush2.msra.mxu0 0.0
    %193 = vmatprep.subr.mxu0 0.0
    %194 = vmatpush2.msra.mxu0 0.0
    %195 = vmatprep.subr.mxu0 0.0
    %196 = vmatpush2.msra.mxu0 0.0
    %197 = vmatprep.subr.mxu0 0.0
    %198 = vmatpush2.msra.mxu0 0.0
    %199 = vmatprep.subr.mxu0 0.0
    %200 = vmatpush2.msra.mxu0 0.0
    %201 = vmatprep.subr.mxu0 0.0
    %202 = vmatpush2.msra.mxu0 0.0
    %203 = vmatprep.subr.mxu0 0.0
    %204 = vmatpush2.msra.mxu0 0.0
    %205 = vmatprep.subr.mxu0 0.0
    %206 = vmatpush2.msra.mxu0 0.0
    %207 = vmatprep.subr.mxu0 0.0
    %208 = vmatpush2.msra.mxu0 0.0
    %209 = vmatprep.subr.mxu0 0.0
    %210 = vmatpush2.msra.mxu0 0.0
    %211 = vmatprep.subr.mxu0 0.0
    %212 = vmatpush2.msra.mxu0 0.0
    %213 = vmatprep.subr.mxu0 0.0
    %214 = vmatpush2.msra.mxu0 0.0
    %215 = vmatprep.subr.mxu0 0.0
    %216 = vmatpush2.msra.mxu0 0.0
    %217 = vmatprep.subr.mxu0 0.0
    %218 = vmatpush2.msra.mxu0 0.0
    %219 = vmatprep.mubr.f32.mxu0 0.0
    %220 = vmatmul.mubr.f32.gmra.mxu0 %v153
    %v221 = vpop.f32.mrf.mxu0
    %v222 = vadd.f32 %v66, %v221
    %v223 = vpop.f32.mrf.mxu0
    %v224 = vadd.f32 %v70, %v223
    %225 = vdwg.mxu0
    %s226 = scalar_lea.vmem [#allocation2], 16
    %227 = vst [vmem:[%s226] sm:$0xff] %v222
    %228 = vst [vmem:[%s226 + $0x8] sm:$0xff] %v224
    %s229 = scalar_lea.vmem %s0, 16
    %v230 = vld [vmem:[%s229] sm:$0xff]
    %v232 = vsel %vm73, %v230, 0
    %234 = vmatprep.subr.mxu0 0.0
    %235 = vmatpush1.msra.mxu0 0.0
    %236 = vmatprep.subr.mxu0 0.0
    %237 = vmatpush1.msra.mxu0 0.0
    %238 = vmatprep.subr.mxu0 0.0
    %239 = vmatpush1.msra.mxu0 0.0
    %240 = vmatprep.subr.mxu0 0.0
    %241 = vmatpush1.msra.mxu0 0.0
    %242 = vmatprep.subr.mxu0 0.0
    %243 = vmatpush1.msra.mxu0 0.0
    %244 = vmatprep.subr.mxu0 0.0
    %245 = vmatpush1.msra.mxu0 0.0
    %246 = vmatprep.subr.mxu0 0.0
    %247 = vmatpush1.msra.mxu0 0.0
    %248 = vmatprep.subr.mxu0 0.0
    %249 = vmatpush1.msra.mxu0 0.0
    %250 = vmatprep.subr.mxu0 0.0
    %251 = vmatpush1.msra.mxu0 0.0
    %252 = vmatprep.subr.mxu0 0.0
    %253 = vmatpush1.msra.mxu0 0.0
    %254 = vmatprep.subr.mxu0 0.0
    %255 = vmatpush1.msra.mxu0 0.0
    %256 = vmatprep.subr.mxu0 0.0
    %257 = vmatpush1.msra.mxu0 0.0
    %258 = vmatprep.subr.mxu0 %v59
    %259 = vmatpush1.msra.mxu0 %v58
    %260 = vmatprep.subr.mxu0 %v57
    %261 = vmatpush1.msra.mxu0 %v56
    %262 = vmatprep.subr.mxu0 %v55
    %263 = vmatpush1.msra.mxu0 %v54
    %264 = vmatprep.subr.mxu0 %v53
    %265 = vmatpush1.msra.mxu0 %v52
    %266 = vmatprep.subr.mxu0 0.0
    %267 = vmatpush2.msra.mxu0 0.0
    %268 = vmatprep.subr.mxu0 0.0
    %269 = vmatpush2.msra.mxu0 0.0
    %270 = vmatprep.subr.mxu0 0.0
    %271 = vmatpush2.msra.mxu0 0.0
    %272 = vmatprep.subr.mxu0 0.0
    %273 = vmatpush2.msra.mxu0 0.0
    %274 = vmatprep.subr.mxu0 0.0
    %275 = vmatpush2.msra.mxu0 0.0
    %276 = vmatprep.subr.mxu0 0.0
    %277 = vmatpush2.msra.mxu0 0.0
    %278 = vmatprep.subr.mxu0 0.0
    %279 = vmatpush2.msra.mxu0 0.0
    %280 = vmatprep.subr.mxu0 0.0
    %281 = vmatpush2.msra.mxu0 0.0
    %282 = vmatprep.subr.mxu0 0.0
    %283 = vmatpush2.msra.mxu0 0.0
    %284 = vmatprep.subr.mxu0 0.0
    %285 = vmatpush2.msra.mxu0 0.0
    %286 = vmatprep.subr.mxu0 0.0
    %287 = vmatpush2.msra.mxu0 0.0
    %288 = vmatprep.subr.mxu0 0.0
    %289 = vmatpush2.msra.mxu0 0.0
    %290 = vmatprep.subr.mxu0 0.0
    %291 = vmatpush2.msra.mxu0 0.0
    %292 = vmatprep.subr.mxu0 0.0
    %293 = vmatpush2.msra.mxu0 0.0
    %294 = vmatprep.subr.mxu0 0.0
    %295 = vmatpush2.msra.mxu0 0.0
    %296 = vmatprep.subr.mxu0 0.0
    %297 = vmatpush2.msra.mxu0 0.0
    %298 = vmatprep.mubr.f32.mxu0 0.0
    %299 = vmatmul.mubr.f32.gmra.mxu0 %v232
    %v300 = vpop.f32.mrf.mxu0
    %v301 = vadd.f32 %v66, %v300
    %v302 = vpop.f32.mrf.mxu0
    %v303 = vadd.f32 %v70, %v302
    %304 = vdwg.mxu0
    %s305 = scalar_lea.vmem [#allocation2], 32
    %306 = vst [vmem:[%s305] sm:$0xff] %v301
    %307 = vst [vmem:[%s305 + $0x8] sm:$0xff] %v303
    %s308 = scalar_lea.vmem %s0, 24
    %v309 = vld [vmem:[%s308] sm:$0xff]
    %v311 = vsel %vm73, %v309, 0
    %313 = vmatprep.subr.mxu0 0.0
    %314 = vmatpush1.msra.mxu0 0.0
    %315 = vmatprep.subr.mxu0 0.0
    %316 = vmatpush1.msra.mxu0 0.0
    %317 = vmatprep.subr.mxu0 0.0
    %318 = vmatpush1.msra.mxu0 0.0
    %319 = vmatprep.subr.mxu0 0.0
    %320 = vmatpush1.msra.mxu0 0.0
    %321 = vmatprep.subr.mxu0 0.0
    %322 = vmatpush1.msra.mxu0 0.0
    %323 = vmatprep.subr.mxu0 0.0
    %324 = vmatpush1.msra.mxu0 0.0
    %325 = vmatprep.subr.mxu0 0.0
    %326 = vmatpush1.msra.mxu0 0.0
    %327 = vmatprep.subr.mxu0 0.0
    %328 = vmatpush1.msra.mxu0 0.0
    %329 = vmatprep.subr.mxu0 0.0
    %330 = vmatpush1.msra.mxu0 0.0
    %331 = vmatprep.subr.mxu0 0.0
    %332 = vmatpush1.msra.mxu0 0.0
    %333 = vmatprep.subr.mxu0 0.0
    %334 = vmatpush1.msra.mxu0 0.0
    %335 = vmatprep.subr.mxu0 0.0
    %336 = vmatpush1.msra.mxu0 0.0
    %337 = vmatprep.subr.mxu0 %v59
    %338 = vmatpush1.msra.mxu0 %v58
    %339 = vmatprep.subr.mxu0 %v57
    %340 = vmatpush1.msra.mxu0 %v56
    %341 = vmatprep.subr.mxu0 %v55
    %342 = vmatpush1.msra.mxu0 %v54
    %343 = vmatprep.subr.mxu0 %v53
    %344 = vmatpush1.msra.mxu0 %v52
    %345 = vmatprep.subr.mxu0 0.0
    %346 = vmatpush2.msra.mxu0 0.0
    %347 = vmatprep.subr.mxu0 0.0
    %348 = vmatpush2.msra.mxu0 0.0
    %349 = vmatprep.subr.mxu0 0.0
    %350 = vmatpush2.msra.mxu0 0.0
    %351 = vmatprep.subr.mxu0 0.0
    %352 = vmatpush2.msra.mxu0 0.0
    %353 = vmatprep.subr.mxu0 0.0
    %354 = vmatpush2.msra.mxu0 0.0
    %355 = vmatprep.subr.mxu0 0.0
    %356 = vmatpush2.msra.mxu0 0.0
    %357 = vmatprep.subr.mxu0 0.0
    %358 = vmatpush2.msra.mxu0 0.0
    %359 = vmatprep.subr.mxu0 0.0
    %360 = vmatpush2.msra.mxu0 0.0
    %361 = vmatprep.subr.mxu0 0.0
    %362 = vmatpush2.msra.mxu0 0.0
    %363 = vmatprep.subr.mxu0 0.0
    %364 = vmatpush2.msra.mxu0 0.0
    %365 = vmatprep.subr.mxu0 0.0
    %366 = vmatpush2.msra.mxu0 0.0
    %367 = vmatprep.subr.mxu0 0.0
    %368 = vmatpush2.msra.mxu0 0.0
    %369 = vmatprep.subr.mxu0 0.0
    %370 = vmatpush2.msra.mxu0 0.0
    %371 = vmatprep.subr.mxu0 0.0
    %372 = vmatpush2.msra.mxu0 0.0
    %373 = vmatprep.subr.mxu0 0.0
    %374 = vmatpush2.msra.mxu0 0.0
    %375 = vmatprep.subr.mxu0 0.0
    %376 = vmatpush2.msra.mxu0 0.0
    %377 = vmatprep.mubr.f32.mxu0 0.0
    %378 = vmatmul.mubr.f32.gmra.mxu0 %v311
    %v379 = vpop.f32.mrf.mxu0
    %v380 = vadd.f32 %v66, %v379
    %v381 = vpop.f32.mrf.mxu0
    %v382 = vadd.f32 %v70, %v381
    %383 = vdwg.mxu0
    %s384 = scalar_lea.vmem [#allocation2], 48
    %385 = vst [vmem:[%s384] sm:$0xff] %v380
    %386 = vst [vmem:[%s384 + $0x8] sm:$0xff] %v382
    %s387 = scalar_lea.vmem %s0, 32
    %v388 = vld [vmem:[%s387] sm:$0xff]
    %v390 = vsel %vm73, %v388, 0
    %392 = vmatprep.subr.mxu0 0.0
    %393 = vmatpush1.msra.mxu0 0.0
    %394 = vmatprep.subr.mxu0 0.0
    %395 = vmatpush1.msra.mxu0 0.0
    %396 = vmatprep.subr.mxu0 0.0
    %397 = vmatpush1.msra.mxu0 0.0
    %398 = vmatprep.subr.mxu0 0.0
    %399 = vmatpush1.msra.mxu0 0.0
    %400 = vmatprep.subr.mxu0 0.0
    %401 = vmatpush1.msra.mxu0 0.0
    %402 = vmatprep.subr.mxu0 0.0
    %403 = vmatpush1.msra.mxu0 0.0
    %404 = vmatprep.subr.mxu0 0.0
    %405 = vmatpush1.msra.mxu0 0.0
    %406 = vmatprep.subr.mxu0 0.0
    %407 = vmatpush1.msra.mxu0 0.0
    %408 = vmatprep.subr.mxu0 0.0
    %409 = vmatpush1.msra.mxu0 0.0
    %410 = vmatprep.subr.mxu0 0.0
    %411 = vmatpush1.msra.mxu0 0.0
    %412 = vmatprep.subr.mxu0 0.0
    %413 = vmatpush1.msra.mxu0 0.0
    %414 = vmatprep.subr.mxu0 0.0
    %415 = vmatpush1.msra.mxu0 0.0
    %416 = vmatprep.subr.mxu0 %v59
    %417 = vmatpush1.msra.mxu0 %v58
    %418 = vmatprep.subr.mxu0 %v57
    %419 = vmatpush1.msra.mxu0 %v56
    %420 = vmatprep.subr.mxu0 %v55
    %421 = vmatpush1.msra.mxu0 %v54
    %422 = vmatprep.subr.mxu0 %v53
    %423 = vmatpush1.msra.mxu0 %v52
    %424 = vmatprep.subr.mxu0 0.0
    %425 = vmatpush2.msra.mxu0 0.0
    %426 = vmatprep.subr.mxu0 0.0
    %427 = vmatpush2.msra.mxu0 0.0
    %428 = vmatprep.subr.mxu0 0.0
    %429 = vmatpush2.msra.mxu0 0.0
    %430 = vmatprep.subr.mxu0 0.0
    %431 = vmatpush2.msra.mxu0 0.0
    %432 = vmatprep.subr.mxu0 0.0
    %433 = vmatpush2.msra.mxu0 0.0
    %434 = vmatprep.subr.mxu0 0.0
    %435 = vmatpush2.msra.mxu0 0.0
    %436 = vmatprep.subr.mxu0 0.0
    %437 = vmatpush2.msra.mxu0 0.0
    %438 = vmatprep.subr.mxu0 0.0
    %439 = vmatpush2.msra.mxu0 0.0
    %440 = vmatprep.subr.mxu0 0.0
    %441 = vmatpush2.msra.mxu0 0.0
    %442 = vmatprep.subr.mxu0 0.0
    %443 = vmatpush2.msra.mxu0 0.0
    %444 = vmatprep.subr.mxu0 0.0
    %445 = vmatpush2.msra.mxu0 0.0
    %446 = vmatprep.subr.mxu0 0.0
    %447 = vmatpush2.msra.mxu0 0.0
    %448 = vmatprep.subr.mxu0 0.0
    %449 = vmatpush2.msra.mxu0 0.0
    %450 = vmatprep.subr.mxu0 0.0
    %451 = vmatpush2.msra.mxu0 0.0
    %452 = vmatprep.subr.mxu0 0.0
    %453 = vmatpush2.msra.mxu0 0.0
    %454 = vmatprep.subr.mxu0 0.0
    %455 = vmatpush2.msra.mxu0 0.0
    %456 = vmatprep.mubr.f32.mxu0 0.0
    %457 = vmatmul.mubr.f32.gmra.mxu0 %v390
    %v458 = vpop.f32.mrf.mxu0
    %v459 = vadd.f32 %v66, %v458
    %v460 = vpop.f32.mrf.mxu0
    %v461 = vadd.f32 %v70, %v460
    %462 = vdwg.mxu0
    %s463 = scalar_lea.vmem [#allocation2], 64
    %464 = vst [vmem:[%s463] sm:$0xff] %v459
    %465 = vst [vmem:[%s463 + $0x8] sm:$0xff] %v461
    %s466 = scalar_lea.vmem %s0, 40
    %v467 = vld [vmem:[%s466] sm:$0xff]
    %v469 = vsel %vm73, %v467, 0
    %471 = vmatprep.subr.mxu0 0.0
    %472 = vmatpush1.msra.mxu0 0.0
    %473 = vmatprep.subr.mxu0 0.0
    %474 = vmatpush1.msra.mxu0 0.0
    %475 = vmatprep.subr.mxu0 0.0
    %476 = vmatpush1.msra.mxu0 0.0
    %477 = vmatprep.subr.mxu0 0.0
    %478 = vmatpush1.msra.mxu0 0.0
    %479 = vmatprep.subr.mxu0 0.0
    %480 = vmatpush1.msra.mxu0 0.0
    %481 = vmatprep.subr.mxu0 0.0
    %482 = vmatpush1.msra.mxu0 0.0
    %483 = vmatprep.subr.mxu0 0.0
    %484 = vmatpush1.msra.mxu0 0.0
    %485 = vmatprep.subr.mxu0 0.0
    %486 = vmatpush1.msra.mxu0 0.0
    %487 = vmatprep.subr.mxu0 0.0
    %488 = vmatpush1.msra.mxu0 0.0
    %489 = vmatprep.subr.mxu0 0.0
    %490 = vmatpush1.msra.mxu0 0.0
    %491 = vmatprep.subr.mxu0 0.0
    %492 = vmatpush1.msra.mxu0 0.0
    %493 = vmatprep.subr.mxu0 0.0
    %494 = vmatpush1.msra.mxu0 0.0
    %495 = vmatprep.subr.mxu0 %v59
    %496 = vmatpush1.msra.mxu0 %v58
    %497 = vmatprep.subr.mxu0 %v57
    %498 = vmatpush1.msra.mxu0 %v56
    %499 = vmatprep.subr.mxu0 %v55
    %500 = vmatpush1.msra.mxu0 %v54
    %501 = vmatprep.subr.mxu0 %v53
    %502 = vmatpush1.msra.mxu0 %v52
    %503 = vmatprep.subr.mxu0 0.0
    %504 = vmatpush2.msra.mxu0 0.0
    %505 = vmatprep.subr.mxu0 0.0
    %506 = vmatpush2.msra.mxu0 0.0
    %507 = vmatprep.subr.mxu0 0.0
    %508 = vmatpush2.msra.mxu0 0.0
    %509 = vmatprep.subr.mxu0 0.0
    %510 = vmatpush2.msra.mxu0 0.0
    %511 = vmatprep.subr.mxu0 0.0
    %512 = vmatpush2.msra.mxu0 0.0
    %513 = vmatprep.subr.mxu0 0.0
    %514 = vmatpush2.msra.mxu0 0.0
    %515 = vmatprep.subr.mxu0 0.0
    %516 = vmatpush2.msra.mxu0 0.0
    %517 = vmatprep.subr.mxu0 0.0
    %518 = vmatpush2.msra.mxu0 0.0
    %519 = vmatprep.subr.mxu0 0.0
    %520 = vmatpush2.msra.mxu0 0.0
    %521 = vmatprep.subr.mxu0 0.0
    %522 = vmatpush2.msra.mxu0 0.0
    %523 = vmatprep.subr.mxu0 0.0
    %524 = vmatpush2.msra.mxu0 0.0
    %525 = vmatprep.subr.mxu0 0.0
    %526 = vmatpush2.msra.mxu0 0.0
    %527 = vmatprep.subr.mxu0 0.0
    %528 = vmatpush2.msra.mxu0 0.0
    %529 = vmatprep.subr.mxu0 0.0
    %530 = vmatpush2.msra.mxu0 0.0
    %531 = vmatprep.subr.mxu0 0.0
    %532 = vmatpush2.msra.mxu0 0.0
    %533 = vmatprep.subr.mxu0 0.0
    %534 = vmatpush2.msra.mxu0 0.0
    %535 = vmatprep.mubr.f32.mxu0 0.0
    %536 = vmatmul.mubr.f32.gmra.mxu0 %v469
    %v537 = vpop.f32.mrf.mxu0
    %v538 = vadd.f32 %v66, %v537
    %v539 = vpop.f32.mrf.mxu0
    %v540 = vadd.f32 %v70, %v539
    %541 = vdwg.mxu0
    %s542 = scalar_lea.vmem [#allocation2], 80
    %543 = vst [vmem:[%s542] sm:$0xff] %v538
    %544 = vst [vmem:[%s542 + $0x8] sm:$0xff] %v540
    %s545 = scalar_lea.vmem %s0, 48
    %v546 = vld [vmem:[%s545] sm:$0xff]
    %v548 = vsel %vm73, %v546, 0
    %550 = vmatprep.subr.mxu0 0.0
    %551 = vmatpush1.msra.mxu0 0.0
    %552 = vmatprep.subr.mxu0 0.0
    %553 = vmatpush1.msra.mxu0 0.0
    %554 = vmatprep.subr.mxu0 0.0
    %555 = vmatpush1.msra.mxu0 0.0
    %556 = vmatprep.subr.mxu0 0.0
    %557 = vmatpush1.msra.mxu0 0.0
    %558 = vmatprep.subr.mxu0 0.0
    %559 = vmatpush1.msra.mxu0 0.0
    %560 = vmatprep.subr.mxu0 0.0
    %561 = vmatpush1.msra.mxu0 0.0
    %562 = vmatprep.subr.mxu0 0.0
    %563 = vmatpush1.msra.mxu0 0.0
    %564 = vmatprep.subr.mxu0 0.0
    %565 = vmatpush1.msra.mxu0 0.0
    %566 = vmatprep.subr.mxu0 0.0
    %567 = vmatpush1.msra.mxu0 0.0
    %568 = vmatprep.subr.mxu0 0.0
    %569 = vmatpush1.msra.mxu0 0.0
    %570 = vmatprep.subr.mxu0 0.0
    %571 = vmatpush1.msra.mxu0 0.0
    %572 = vmatprep.subr.mxu0 0.0
    %573 = vmatpush1.msra.mxu0 0.0
    %574 = vmatprep.subr.mxu0 %v59
    %575 = vmatpush1.msra.mxu0 %v58
    %576 = vmatprep.subr.mxu0 %v57
    %577 = vmatpush1.msra.mxu0 %v56
    %578 = vmatprep.subr.mxu0 %v55
    %579 = vmatpush1.msra.mxu0 %v54
    %580 = vmatprep.subr.mxu0 %v53
    %581 = vmatpush1.msra.mxu0 %v52
    %582 = vmatprep.subr.mxu0 0.0
    %583 = vmatpush2.msra.mxu0 0.0
    %584 = vmatprep.subr.mxu0 0.0
    %585 = vmatpush2.msra.mxu0 0.0
    %586 = vmatprep.subr.mxu0 0.0
    %587 = vmatpush2.msra.mxu0 0.0
    %588 = vmatprep.subr.mxu0 0.0
    %589 = vmatpush2.msra.mxu0 0.0
    %590 = vmatprep.subr.mxu0 0.0
    %591 = vmatpush2.msra.mxu0 0.0
    %592 = vmatprep.subr.mxu0 0.0
    %593 = vmatpush2.msra.mxu0 0.0
    %594 = vmatprep.subr.mxu0 0.0
    %595 = vmatpush2.msra.mxu0 0.0
    %596 = vmatprep.subr.mxu0 0.0
    %597 = vmatpush2.msra.mxu0 0.0
    %598 = vmatprep.subr.mxu0 0.0
    %599 = vmatpush2.msra.mxu0 0.0
    %600 = vmatprep.subr.mxu0 0.0
    %601 = vmatpush2.msra.mxu0 0.0
    %602 = vmatprep.subr.mxu0 0.0
    %603 = vmatpush2.msra.mxu0 0.0
    %604 = vmatprep.subr.mxu0 0.0
    %605 = vmatpush2.msra.mxu0 0.0
    %606 = vmatprep.subr.mxu0 0.0
    %607 = vmatpush2.msra.mxu0 0.0
    %608 = vmatprep.subr.mxu0 0.0
    %609 = vmatpush2.msra.mxu0 0.0
    %610 = vmatprep.subr.mxu0 0.0
    %611 = vmatpush2.msra.mxu0 0.0
    %612 = vmatprep.subr.mxu0 0.0
    %613 = vmatpush2.msra.mxu0 0.0
    %614 = vmatprep.mubr.f32.mxu0 0.0
    %615 = vmatmul.mubr.f32.gmra.mxu0 %v548
    %v616 = vpop.f32.mrf.mxu0
    %v617 = vadd.f32 %v66, %v616
    %v618 = vpop.f32.mrf.mxu0
    %v619 = vadd.f32 %v70, %v618
    %620 = vdwg.mxu0
    %s621 = scalar_lea.vmem [#allocation2], 96
    %622 = vst [vmem:[%s621] sm:$0xff] %v617
    %623 = vst [vmem:[%s621 + $0x8] sm:$0xff] %v619
    %s624 = scalar_lea.vmem %s0, 56
    %v625 = vld [vmem:[%s624] sm:$0xff]
    %v627 = vsel %vm73, %v625, 0
    %629 = vmatprep.subr.mxu0 0.0
    %630 = vmatpush1.msra.mxu0 0.0
    %631 = vmatprep.subr.mxu0 0.0
    %632 = vmatpush1.msra.mxu0 0.0
    %633 = vmatprep.subr.mxu0 0.0
    %634 = vmatpush1.msra.mxu0 0.0
    %635 = vmatprep.subr.mxu0 0.0
    %636 = vmatpush1.msra.mxu0 0.0
    %637 = vmatprep.subr.mxu0 0.0
    %638 = vmatpush1.msra.mxu0 0.0
    %639 = vmatprep.subr.mxu0 0.0
    %640 = vmatpush1.msra.mxu0 0.0
    %641 = vmatprep.subr.mxu0 0.0
    %642 = vmatpush1.msra.mxu0 0.0
    %643 = vmatprep.subr.mxu0 0.0
    %644 = vmatpush1.msra.mxu0 0.0
    %645 = vmatprep.subr.mxu0 0.0
    %646 = vmatpush1.msra.mxu0 0.0
    %647 = vmatprep.subr.mxu0 0.0
    %648 = vmatpush1.msra.mxu0 0.0
    %649 = vmatprep.subr.mxu0 0.0
    %650 = vmatpush1.msra.mxu0 0.0
    %651 = vmatprep.subr.mxu0 0.0
    %652 = vmatpush1.msra.mxu0 0.0
    %653 = vmatprep.subr.mxu0 %v59
    %654 = vmatpush1.msra.mxu0 %v58
    %655 = vmatprep.subr.mxu0 %v57
    %656 = vmatpush1.msra.mxu0 %v56
    %657 = vmatprep.subr.mxu0 %v55
    %658 = vmatpush1.msra.mxu0 %v54
    %659 = vmatprep.subr.mxu0 %v53
    %660 = vmatpush1.msra.mxu0 %v52
    %661 = vmatprep.subr.mxu0 0.0
    %662 = vmatpush2.msra.mxu0 0.0
    %663 = vmatprep.subr.mxu0 0.0
    %664 = vmatpush2.msra.mxu0 0.0
    %665 = vmatprep.subr.mxu0 0.0
    %666 = vmatpush2.msra.mxu0 0.0
    %667 = vmatprep.subr.mxu0 0.0
    %668 = vmatpush2.msra.mxu0 0.0
    %669 = vmatprep.subr.mxu0 0.0
    %670 = vmatpush2.msra.mxu0 0.0
    %671 = vmatprep.subr.mxu0 0.0
    %672 = vmatpush2.msra.mxu0 0.0
    %673 = vmatprep.subr.mxu0 0.0
    %674 = vmatpush2.msra.mxu0 0.0
    %675 = vmatprep.subr.mxu0 0.0
    %676 = vmatpush2.msra.mxu0 0.0
    %677 = vmatprep.subr.mxu0 0.0
    %678 = vmatpush2.msra.mxu0 0.0
    %679 = vmatprep.subr.mxu0 0.0
    %680 = vmatpush2.msra.mxu0 0.0
    %681 = vmatprep.subr.mxu0 0.0
    %682 = vmatpush2.msra.mxu0 0.0
    %683 = vmatprep.subr.mxu0 0.0
    %684 = vmatpush2.msra.mxu0 0.0
    %685 = vmatprep.subr.mxu0 0.0
    %686 = vmatpush2.msra.mxu0 0.0
    %687 = vmatprep.subr.mxu0 0.0
    %688 = vmatpush2.msra.mxu0 0.0
    %689 = vmatprep.subr.mxu0 0.0
    %690 = vmatpush2.msra.mxu0 0.0
    %691 = vmatprep.subr.mxu0 0.0
    %692 = vmatpush2.msra.mxu0 0.0
    %693 = vmatprep.mubr.f32.mxu0 0.0
    %694 = vmatmul.mubr.f32.gmra.mxu0 %v627
    %v695 = vpop.f32.mrf.mxu0
    %v696 = vadd.f32 %v66, %v695
    %v697 = vpop.f32.mrf.mxu0
    %v698 = vadd.f32 %v70, %v697
    %699 = vdwg.mxu0
    %s700 = scalar_lea.vmem [#allocation2], 112
    %701 = vst [vmem:[%s700] sm:$0xff] %v696
    %702 = vst [vmem:[%s700 + $0x8] sm:$0xff] %v698
    %v703 = vld [vmem:[#allocation6] sm:$0xff]
    %v704 = vld [vmem:[#allocation6 + $0x8] sm:$0xff]
    %v705 = vld [vmem:[#allocation6 + $0x10] sm:$0xff]
    %v706 = vld [vmem:[#allocation6 + $0x18] sm:$0xff]
    %v707 = vld [vmem:[#allocation6 + $0x20] sm:$0xff]
    %v708 = vld [vmem:[#allocation6 + $0x28] sm:$0xff]
    %v709 = vld [vmem:[#allocation6 + $0x30] sm:$0xff]
    %v710 = vld [vmem:[#allocation6 + $0x38] sm:$0xff]
    %v711 = vld [vmem:[#allocation6 + $0x40] sm:$0xff]
    %v712 = vld [vmem:[#allocation6 + $0x48] sm:$0xff]
    %v713 = vld [vmem:[#allocation6 + $0x50] sm:$0xff]
    %v714 = vld [vmem:[#allocation6 + $0x58] sm:$0xff]
    %v715 = vld [vmem:[#allocation6 + $0x60] sm:$0xff]
    %v716 = vld [vmem:[#allocation6 + $0x68] sm:$0xff]
    %v717 = vld [vmem:[#allocation6 + $0x70] sm:$0xff]
    %v718 = vld [vmem:[#allocation6 + $0x78] sm:$0xff]
    %v719 = vlaneseq
    %v720 = vand.u32 %v719, 127
    %v721 = vadd.s32 %v720, 128
    %vm722 = vcmp.lt.s32.totalorder %v720, 0
    %v723 = vsub.s32 0, %v720
    %v724 = vsel %vm722, %v723, %v720
    %v725 = vshrl.u32 %v724, 6
    %v726 = vand.u32 %v724, 63
    %v727 = vsub.s32 0, %v726
    %v728 = vsel %vm722, %v727, %v726
    %vm729 = vcmp.lt.s32.totalorder %v721, 0
    %v730 = vsub.s32 0, %v721
    %v731 = vsel %vm729, %v730, %v721
    %v732 = vshrl.u32 %v731, 6
    %v733 = vand.u32 %v731, 63
    %v734 = vsub.s32 0, %v733
    %v735 = vsel %vm729, %v734, %v733
    %vm736 = vcmp.ne.s32.totalorder %v728, 0
    %vm737 = vcmp.ne.s32.totalorder %v735, 0
    %vm738 = vcmp.lt.s32.totalorder %v728, 0
    %vm739 = vcmp.lt.s32.totalorder %v735, 0
    %vm740 = vmand %vm738, %vm736
    %vm741 = vmand %vm739, %vm737
    %v742 = vadd.s32 %v728, 64
    %v743 = vadd.s32 %v735, 64
    %v744 = vsel %vm740, %v742, %v728
    %v745 = vsel %vm741, %v743, %v735
    %vm746 = vcmp.lt.s32.totalorder %v744, 32
    %vm747 = vcmp.lt.s32.totalorder %v745, 32
    %vm748 = vcmp.ge.s32.totalorder %v720, 128
    %vm749 = vcmp.ge.s32.totalorder %v721, 128
    %vm750 = vcmp.lt.s32.totalorder %v720, 192
    %vm751 = vcmp.lt.s32.totalorder %v721, 192
    %vm752 = vmand %vm748, %vm750
    %vm753 = vmand %vm749, %vm751
    %v754 = vld [vmem:[#allocation2] sm:$0xff]
    %v755 = vld [vmem:[#allocation2 + $0x8] sm:$0xff]
    %v756 = vld [vmem:[%s700] sm:$0xff]
    %v757 = vld [vmem:[%s700 + $0x8] sm:$0xff]
    %v758 = vsel %vm746, %v754, %v756
    %v759 = vsel %vm747, %v755, %v757
    %vm760 = vcmask 523264
    %v762 = vsel %vm760, 0.0, 0
    %764 = vmatprep.subr.mxu0 0.0
    %765 = vmatpush1.msra.mxu0 0.0
    %766 = vmatprep.subr.mxu0 0.0
    %767 = vmatpush1.msra.mxu0 0.0
    %768 = vmatprep.subr.mxu0 0.0
    %769 = vmatpush1.msra.mxu0 0.0
    %770 = vmatprep.subr.mxu0 0.0
    %771 = vmatpush1.msra.mxu0 0.0
    %772 = vmatprep.subr.mxu0 0.0
    %773 = vmatpush1.msra.mxu0 0.0
    %774 = vmatprep.subr.mxu0 0.0
    %775 = vmatpush1.msra.mxu0 0.0
    %776 = vmatprep.subr.mxu0 0.0
    %777 = vmatpush1.msra.mxu0 0.0
    %778 = vmatprep.subr.mxu0 0.0
    %779 = vmatpush1.msra.mxu0 0.0
    %780 = vmatprep.subr.mxu0 %v718
    %781 = vmatpush1.msra.mxu0 %v717
    %782 = vmatprep.subr.mxu0 %v716
    %783 = vmatpush1.msra.mxu0 %v715
    %784 = vmatprep.subr.mxu0 %v714
    %785 = vmatpush1.msra.mxu0 %v713
    %786 = vmatprep.subr.mxu0 %v712
    %787 = vmatpush1.msra.mxu0 %v711
    %788 = vmatprep.subr.mxu0 %v710
    %789 = vmatpush1.msra.mxu0 %v709
    %790 = vmatprep.subr.mxu0 %v708
    %791 = vmatpush1.msra.mxu0 %v707
    %792 = vmatprep.subr.mxu0 %v706
    %793 = vmatpush1.msra.mxu0 %v705
    %794 = vmatprep.subr.mxu0 %v704
    %795 = vmatpush1.msra.mxu0 %v703
    %796 = vmatprep.subr.mxu0 0.0
    %797 = vmatpush2.msra.mxu0 0.0
    %798 = vmatprep.subr.mxu0 0.0
    %799 = vmatpush2.msra.mxu0 0.0
    %800 = vmatprep.subr.mxu0 0.0
    %801 = vmatpush2.msra.mxu0 0.0
    %802 = vmatprep.subr.mxu0 0.0
    %803 = vmatpush2.msra.mxu0 0.0
    %804 = vmatprep.subr.mxu0 0.0
    %805 = vmatpush2.msra.mxu0 0.0
    %806 = vmatprep.subr.mxu0 0.0
    %807 = vmatpush2.msra.mxu0 0.0
    %808 = vmatprep.subr.mxu0 0.0
    %809 = vmatpush2.msra.mxu0 0.0
    %810 = vmatprep.subr.mxu0 0.0
    %811 = vmatpush2.msra.mxu0 0.0
    %812 = vmatprep.subr.mxu0 0.0
    %813 = vmatpush2.msra.mxu0 0.0
    %814 = vmatprep.subr.mxu0 0.0
    %815 = vmatpush2.msra.mxu0 0.0
    %816 = vmatprep.subr.mxu0 0.0
    %817 = vmatpush2.msra.mxu0 0.0
    %818 = vmatprep.subr.mxu0 0.0
    %819 = vmatpush2.msra.mxu0 0.0
    %820 = vmatprep.subr.mxu0 0.0
    %821 = vmatpush2.msra.mxu0 0.0
    %822 = vmatprep.subr.mxu0 0.0
    %823 = vmatpush2.msra.mxu0 0.0
    %824 = vmatprep.subr.mxu0 0.0
    %825 = vmatpush2.msra.mxu0 0.0
    %826 = vmatprep.subr.mxu0 0.0
    %827 = vmatpush2.msra.mxu0 0.0
    %828 = vmatprep.mubr.f32.mxu0 0.0
    %829 = vmatmul.mubr.f32.gmra.mxu0 %v762
    %v830 = vpop.f32.mrf.mxu0
    %v831 = vadd.f32 0.0, %v830
    %v832 = vpop.f32.mrf.mxu0
    %v833 = vadd.f32 0.0, %v832
    %834 = vdwg.mxu0
    %v835 = vadd.f32 %v758, %v831
    %v836 = vadd.f32 %v759, %v833
    %v837 = vtanh.pop %v835
    %v838 = vtanh.pop %v836
    %v839 = vxor.u32 %v835, 2147483648
    %v840 = vxor.u32 %v836, 2147483648
    %v841 = vmul.f32 %v839, 1.442695
    %v842 = vpow.pop %v841
    %v843 = vmul.f32 %v840, 1.442695
    %v844 = vpow.pop %v843
    %v845 = vadd.f32 %v842, 1.0
    %v846 = vadd.f32 %v844, 1.0
    %v847 = vrcp.pop %v845
    %v848 = vmul.f32 1.0, %v847
    %v849 = vrcp.pop %v846
    %v850 = vmul.f32 1.0, %v849
    %v851 = vsel %vm752, %v837, %v848
    %v852 = vsel %vm753, %v838, %v850
    %v853 = vmul.f32 %v851, 0.0
    %v854 = vmul.f32 %v851, %v852
    %856 = vrot.lane.b32.xlu0 %v854, 64
    %v857 = vpop.permute.xlu0 %856
    %v859 = vadd.f32 %v853, %v857
    %v860 = vtanh.pop %v859
    %v861 = vmul.f32 %v852, %v860
    %v862 = vld [vmem:[%s226] sm:$0xff]
    %v863 = vld [vmem:[%s226 + $0x8] sm:$0xff]
    %v864 = vld [vmem:[%s621] sm:$0xff]
    %v865 = vld [vmem:[%s621 + $0x8] sm:$0xff]
    %v866 = vsel %vm746, %v862, %v864
    %v867 = vsel %vm747, %v863, %v865
    %869 = vrot.lane.b32.xlu0 %v861, 64
    %v870 = vpop.permute.xlu0 %869
    %v871 = vsel %vm760, %v870, 0
    %873 = vmatprep.subr.mxu0 0.0
    %874 = vmatpush1.msra.mxu0 0.0
    %875 = vmatprep.subr.mxu0 0.0
    %876 = vmatpush1.msra.mxu0 0.0
    %877 = vmatprep.subr.mxu0 0.0
    %878 = vmatpush1.msra.mxu0 0.0
    %879 = vmatprep.subr.mxu0 0.0
    %880 = vmatpush1.msra.mxu0 0.0
    %881 = vmatprep.subr.mxu0 0.0
    %882 = vmatpush1.msra.mxu0 0.0
    %883 = vmatprep.subr.mxu0 0.0
    %884 = vmatpush1.msra.mxu0 0.0
    %885 = vmatprep.subr.mxu0 0.0
    %886 = vmatpush1.msra.mxu0 0.0
    %887 = vmatprep.subr.mxu0 0.0
    %888 = vmatpush1.msra.mxu0 0.0
    %889 = vmatprep.subr.mxu0 %v718
    %890 = vmatpush1.msra.mxu0 %v717
    %891 = vmatprep.subr.mxu0 %v716
    %892 = vmatpush1.msra.mxu0 %v715
    %893 = vmatprep.subr.mxu0 %v714
    %894 = vmatpush1.msra.mxu0 %v713
    %895 = vmatprep.subr.mxu0 %v712
    %896 = vmatpush1.msra.mxu0 %v711
    %897 = vmatprep.subr.mxu0 %v710
    %898 = vmatpush1.msra.mxu0 %v709
    %899 = vmatprep.subr.mxu0 %v708
    %900 = vmatpush1.msra.mxu0 %v707
    %901 = vmatprep.subr.mxu0 %v706
    %902 = vmatpush1.msra.mxu0 %v705
    %903 = vmatprep.subr.mxu0 %v704
    %904 = vmatpush1.msra.mxu0 %v703
    %905 = vmatprep.subr.mxu0 0.0
    %906 = vmatpush2.msra.mxu0 0.0
    %907 = vmatprep.subr.mxu0 0.0
    %908 = vmatpush2.msra.mxu0 0.0
    %909 = vmatprep.subr.mxu0 0.0
    %910 = vmatpush2.msra.mxu0 0.0
    %911 = vmatprep.subr.mxu0 0.0
    %912 = vmatpush2.msra.mxu0 0.0
    %913 = vmatprep.subr.mxu0 0.0
    %914 = vmatpush2.msra.mxu0 0.0
    %915 = vmatprep.subr.mxu0 0.0
    %916 = vmatpush2.msra.mxu0 0.0
    %917 = vmatprep.subr.mxu0 0.0
    %918 = vmatpush2.msra.mxu0 0.0
    %919 = vmatprep.subr.mxu0 0.0
    %920 = vmatpush2.msra.mxu0 0.0
    %921 = vmatprep.subr.mxu0 0.0
    %922 = vmatpush2.msra.mxu0 0.0
    %923 = vmatprep.subr.mxu0 0.0
    %924 = vmatpush2.msra.mxu0 0.0
    %925 = vmatprep.subr.mxu0 0.0
    %926 = vmatpush2.msra.mxu0 0.0
    %927 = vmatprep.subr.mxu0 0.0
    %928 = vmatpush2.msra.mxu0 0.0
    %929 = vmatprep.subr.mxu0 0.0
    %930 = vmatpush2.msra.mxu0 0.0
    %931 = vmatprep.subr.mxu0 0.0
    %932 = vmatpush2.msra.mxu0 0.0
    %933 = vmatprep.subr.mxu0 0.0
    %934 = vmatpush2.msra.mxu0 0.0
    %935 = vmatprep.subr.mxu0 0.0
    %936 = vmatpush2.msra.mxu0 0.0
    %937 = vmatprep.mubr.f32.mxu0 0.0
    %938 = vmatmul.mubr.f32.gmra.mxu0 %v871
    %v939 = vpop.f32.mrf.mxu0
    %v940 = vadd.f32 0.0, %v939
    %v941 = vpop.f32.mrf.mxu0
    %v942 = vadd.f32 0.0, %v941
    %943 = vdwg.mxu0
    %v944 = vadd.f32 %v866, %v940
    %v945 = vadd.f32 %v867, %v942
    %v946 = vtanh.pop %v944
    %v947 = vtanh.pop %v945
    %v948 = vxor.u32 %v944, 2147483648
    %v949 = vxor.u32 %v945, 2147483648
    %v950 = vmul.f32 %v948, 1.442695
    %v951 = vpow.pop %v950
    %v952 = vmul.f32 %v949, 1.442695
    %v953 = vpow.pop %v952
    %v954 = vadd.f32 %v951, 1.0
    %v955 = vadd.f32 %v953, 1.0
    %v956 = vrcp.pop %v954
    %v957 = vmul.f32 1.0, %v956
    %v958 = vrcp.pop %v955
    %v959 = vmul.f32 1.0, %v958
    %v960 = vsel %vm752, %v946, %v957
    %v961 = vsel %vm753, %v947, %v959
    %v962 = vmul.f32 %v960, %v859
    %v963 = vmul.f32 %v960, %v961
    %965 = vrot.lane.b32.xlu0 %v963, 64
    %v966 = vpop.permute.xlu0 %965
    %v968 = vadd.f32 %v962, %v966
    %v969 = vtanh.pop %v968
    %v970 = vmul.f32 %v961, %v969
    %v971 = vld [vmem:[%s305] sm:$0xff]
    %v972 = vld [vmem:[%s305 + $0x8] sm:$0xff]
    %v973 = vld [vmem:[%s542] sm:$0xff]
    %v974 = vld [vmem:[%s542 + $0x8] sm:$0xff]
    %v975 = vsel %vm746, %v971, %v973
    %v976 = vsel %vm747, %v972, %v974
    %978 = vrot.lane.b32.xlu0 %v970, 64
    %v979 = vpop.permute.xlu0 %978
    %v980 = vsel %vm760, %v979, 0
    %982 = vmatprep.subr.mxu0 0.0
    %983 = vmatpush1.msra.mxu0 0.0
    %984 = vmatprep.subr.mxu0 0.0
    %985 = vmatpush1.msra.mxu0 0.0
    %986 = vmatprep.subr.mxu0 0.0
    %987 = vmatpush1.msra.mxu0 0.0
    %988 = vmatprep.subr.mxu0 0.0
    %989 = vmatpush1.msra.mxu0 0.0
    %990 = vmatprep.subr.mxu0 0.0
    %991 = vmatpush1.msra.mxu0 0.0
    %992 = vmatprep.subr.mxu0 0.0
    %993 = vmatpush1.msra.mxu0 0.0
    %994 = vmatprep.subr.mxu0 0.0
    %995 = vmatpush1.msra.mxu0 0.0
    %996 = vmatprep.subr.mxu0 0.0
    %997 = vmatpush1.msra.mxu0 0.0
    %998 = vmatprep.subr.mxu0 %v718
    %999 = vmatpush1.msra.mxu0 %v717
    %1000 = vmatprep.subr.mxu0 %v716
    %1001 = vmatpush1.msra.mxu0 %v715
    %1002 = vmatprep.subr.mxu0 %v714
    %1003 = vmatpush1.msra.mxu0 %v713
    %1004 = vmatprep.subr.mxu0 %v712
    %1005 = vmatpush1.msra.mxu0 %v711
    %1006 = vmatprep.subr.mxu0 %v710
    %1007 = vmatpush1.msra.mxu0 %v709
    %1008 = vmatprep.subr.mxu0 %v708
    %1009 = vmatpush1.msra.mxu0 %v707
    %1010 = vmatprep.subr.mxu0 %v706
    %1011 = vmatpush1.msra.mxu0 %v705
    %1012 = vmatprep.subr.mxu0 %v704
    %1013 = vmatpush1.msra.mxu0 %v703
    %1014 = vmatprep.subr.mxu0 0.0
    %1015 = vmatpush2.msra.mxu0 0.0
    %1016 = vmatprep.subr.mxu0 0.0
    %1017 = vmatpush2.msra.mxu0 0.0
    %1018 = vmatprep.subr.mxu0 0.0
    %1019 = vmatpush2.msra.mxu0 0.0
    %1020 = vmatprep.subr.mxu0 0.0
    %1021 = vmatpush2.msra.mxu0 0.0
    %1022 = vmatprep.subr.mxu0 0.0
    %1023 = vmatpush2.msra.mxu0 0.0
    %1024 = vmatprep.subr.mxu0 0.0
    %1025 = vmatpush2.msra.mxu0 0.0
    %1026 = vmatprep.subr.mxu0 0.0
    %1027 = vmatpush2.msra.mxu0 0.0
    %1028 = vmatprep.subr.mxu0 0.0
    %1029 = vmatpush2.msra.mxu0 0.0
    %1030 = vmatprep.subr.mxu0 0.0
    %1031 = vmatpush2.msra.mxu0 0.0
    %1032 = vmatprep.subr.mxu0 0.0
    %1033 = vmatpush2.msra.mxu0 0.0
    %1034 = vmatprep.subr.mxu0 0.0
    %1035 = vmatpush2.msra.mxu0 0.0
    %1036 = vmatprep.subr.mxu0 0.0
    %1037 = vmatpush2.msra.mxu0 0.0
    %1038 = vmatprep.subr.mxu0 0.0
    %1039 = vmatpush2.msra.mxu0 0.0
    %1040 = vmatprep.subr.mxu0 0.0
    %1041 = vmatpush2.msra.mxu0 0.0
    %1042 = vmatprep.subr.mxu0 0.0
    %1043 = vmatpush2.msra.mxu0 0.0
    %1044 = vmatprep.subr.mxu0 0.0
    %1045 = vmatpush2.msra.mxu0 0.0
    %1046 = vmatprep.mubr.f32.mxu0 0.0
    %1047 = vmatmul.mubr.f32.gmra.mxu0 %v980
    %v1048 = vpop.f32.mrf.mxu0
    %v1049 = vadd.f32 0.0, %v1048
    %v1050 = vpop.f32.mrf.mxu0
    %v1051 = vadd.f32 0.0, %v1050
    %1052 = vdwg.mxu0
    %v1053 = vadd.f32 %v975, %v1049
    %v1054 = vadd.f32 %v976, %v1051
    %v1055 = vtanh.pop %v1053
    %v1056 = vtanh.pop %v1054
    %v1057 = vxor.u32 %v1053, 2147483648
    %v1058 = vxor.u32 %v1054, 2147483648
    %v1059 = vmul.f32 %v1057, 1.442695
    %v1060 = vpow.pop %v1059
    %v1061 = vmul.f32 %v1058, 1.442695
    %v1062 = vpow.pop %v1061
    %v1063 = vadd.f32 %v1060, 1.0
    %v1064 = vadd.f32 %v1062, 1.0
    %v1065 = vrcp.pop %v1063
    %v1066 = vmul.f32 1.0, %v1065
    %v1067 = vrcp.pop %v1064
    %v1068 = vmul.f32 1.0, %v1067
    %v1069 = vsel %vm752, %v1055, %v1066
    %v1070 = vsel %vm753, %v1056, %v1068
    %v1071 = vmul.f32 %v1069, %v968
    %v1072 = vmul.f32 %v1069, %v1070
    %1074 = vrot.lane.b32.xlu0 %v1072, 64
    %v1075 = vpop.permute.xlu0 %1074
    %v1077 = vadd.f32 %v1071, %v1075
    %v1078 = vtanh.pop %v1077
    %v1079 = vmul.f32 %v1070, %v1078
    %v1080 = vld [vmem:[%s384] sm:$0xff]
    %v1081 = vld [vmem:[%s384 + $0x8] sm:$0xff]
    %v1082 = vld [vmem:[%s463] sm:$0xff]
    %v1083 = vld [vmem:[%s463 + $0x8] sm:$0xff]
    %v1084 = vsel %vm746, %v1080, %v1082
    %v1085 = vsel %vm747, %v1081, %v1083
    %1087 = vrot.lane.b32.xlu0 %v1079, 64
    %v1088 = vpop.permute.xlu0 %1087
    %v1089 = vsel %vm760, %v1088, 0
    %1091 = vmatprep.subr.mxu0 0.0
    %1092 = vmatpush1.msra.mxu0 0.0
    %1093 = vmatprep.subr.mxu0 0.0
    %1094 = vmatpush1.msra.mxu0 0.0
    %1095 = vmatprep.subr.mxu0 0.0
    %1096 = vmatpush1.msra.mxu0 0.0
    %1097 = vmatprep.subr.mxu0 0.0
    %1098 = vmatpush1.msra.mxu0 0.0
    %1099 = vmatprep.subr.mxu0 0.0
    %1100 = vmatpush1.msra.mxu0 0.0
    %1101 = vmatprep.subr.mxu0 0.0
    %1102 = vmatpush1.msra.mxu0 0.0
    %1103 = vmatprep.subr.mxu0 0.0
    %1104 = vmatpush1.msra.mxu0 0.0
    %1105 = vmatprep.subr.mxu0 0.0
    %1106 = vmatpush1.msra.mxu0 0.0
    %1107 = vmatprep.subr.mxu0 %v718
    %1108 = vmatpush1.msra.mxu0 %v717
    %1109 = vmatprep.subr.mxu0 %v716
    %1110 = vmatpush1.msra.mxu0 %v715
    %1111 = vmatprep.subr.mxu0 %v714
    %1112 = vmatpush1.msra.mxu0 %v713
    %1113 = vmatprep.subr.mxu0 %v712
    %1114 = vmatpush1.msra.mxu0 %v711
    %1115 = vmatprep.subr.mxu0 %v710
    %1116 = vmatpush1.msra.mxu0 %v709
    %1117 = vmatprep.subr.mxu0 %v708
    %1118 = vmatpush1.msra.mxu0 %v707
    %1119 = vmatprep.subr.mxu0 %v706
    %1120 = vmatpush1.msra.mxu0 %v705
    %1121 = vmatprep.subr.mxu0 %v704
    %1122 = vmatpush1.msra.mxu0 %v703
    %1123 = vmatprep.subr.mxu0 0.0
    %1124 = vmatpush2.msra.mxu0 0.0
    %1125 = vmatprep.subr.mxu0 0.0
    %1126 = vmatpush2.msra.mxu0 0.0
    %1127 = vmatprep.subr.mxu0 0.0
    %1128 = vmatpush2.msra.mxu0 0.0
    %1129 = vmatprep.subr.mxu0 0.0
    %1130 = vmatpush2.msra.mxu0 0.0
    %1131 = vmatprep.subr.mxu0 0.0
    %1132 = vmatpush2.msra.mxu0 0.0
    %1133 = vmatprep.subr.mxu0 0.0
    %1134 = vmatpush2.msra.mxu0 0.0
    %1135 = vmatprep.subr.mxu0 0.0
    %1136 = vmatpush2.msra.mxu0 0.0
    %1137 = vmatprep.subr.mxu0 0.0
    %1138 = vmatpush2.msra.mxu0 0.0
    %1139 = vmatprep.subr.mxu0 0.0
    %1140 = vmatpush2.msra.mxu0 0.0
    %1141 = vmatprep.subr.mxu0 0.0
    %1142 = vmatpush2.msra.mxu0 0.0
    %1143 = vmatprep.subr.mxu0 0.0
    %1144 = vmatpush2.msra.mxu0 0.0
    %1145 = vmatprep.subr.mxu0 0.0
    %1146 = vmatpush2.msra.mxu0 0.0
    %1147 = vmatprep.subr.mxu0 0.0
    %1148 = vmatpush2.msra.mxu0 0.0
    %1149 = vmatprep.subr.mxu0 0.0
    %1150 = vmatpush2.msra.mxu0 0.0
    %1151 = vmatprep.subr.mxu0 0.0
    %1152 = vmatpush2.msra.mxu0 0.0
    %1153 = vmatprep.subr.mxu0 0.0
    %1154 = vmatpush2.msra.mxu0 0.0
    %1155 = vmatprep.mubr.f32.mxu0 0.0
    %1156 = vmatmul.mubr.f32.gmra.mxu0 %v1089
    %v1157 = vpop.f32.mrf.mxu0
    %v1158 = vadd.f32 0.0, %v1157
    %v1159 = vpop.f32.mrf.mxu0
    %v1160 = vadd.f32 0.0, %v1159
    %1161 = vdwg.mxu0
    %v1162 = vadd.f32 %v1084, %v1158
    %v1163 = vadd.f32 %v1085, %v1160
    %v1164 = vtanh.pop %v1162
    %v1165 = vtanh.pop %v1163
    %v1166 = vxor.u32 %v1162, 2147483648
    %v1167 = vxor.u32 %v1163, 2147483648
    %v1168 = vmul.f32 %v1166, 1.442695
    %v1169 = vpow.pop %v1168
    %v1170 = vmul.f32 %v1167, 1.442695
    %v1171 = vpow.pop %v1170
    %v1172 = vadd.f32 %v1169, 1.0
    %v1173 = vadd.f32 %v1171, 1.0
    %v1174 = vrcp.pop %v1172
    %v1175 = vmul.f32 1.0, %v1174
    %v1176 = vrcp.pop %v1173
    %v1177 = vmul.f32 1.0, %v1176
    %v1178 = vsel %vm752, %v1164, %v1175
    %v1179 = vsel %vm753, %v1165, %v1177
    %v1180 = vmul.f32 %v1178, %v1077
    %v1181 = vmul.f32 %v1178, %v1179
    %1183 = vrot.lane.b32.xlu0 %v1181, 64
    %v1184 = vpop.permute.xlu0 %1183
    %v1186 = vadd.f32 %v1180, %v1184
    %v1187 = vtanh.pop %v1186
    %v1188 = vmul.f32 %v1179, %v1187
    %v1189 = vsel %vm746, %v1082, %v1080
    %v1190 = vsel %vm747, %v1083, %v1081
    %1192 = vrot.lane.b32.xlu0 %v1188, 64
    %v1193 = vpop.permute.xlu0 %1192
    %v1194 = vsel %vm760, %v1193, 0
    %1196 = vmatprep.subr.mxu0 0.0
    %1197 = vmatpush1.msra.mxu0 0.0
    %1198 = vmatprep.subr.mxu0 0.0
    %1199 = vmatpush1.msra.mxu0 0.0
    %1200 = vmatprep.subr.mxu0 0.0
    %1201 = vmatpush1.msra.mxu0 0.0
    %1202 = vmatprep.subr.mxu0 0.0
    %1203 = vmatpush1.msra.mxu0 0.0
    %1204 = vmatprep.subr.mxu0 0.0
    %1205 = vmatpush1.msra.mxu0 0.0
    %1206 = vmatprep.subr.mxu0 0.0
    %1207 = vmatpush1.msra.mxu0 0.0
    %1208 = vmatprep.subr.mxu0 0.0
    %1209 = vmatpush1.msra.mxu0 0.0
    %1210 = vmatprep.subr.mxu0 0.0
    %1211 = vmatpush1.msra.mxu0 0.0
    %1212 = vmatprep.subr.mxu0 %v718
    %1213 = vmatpush1.msra.mxu0 %v717
    %1214 = vmatprep.subr.mxu0 %v716
    %1215 = vmatpush1.msra.mxu0 %v715
    %1216 = vmatprep.subr.mxu0 %v714
    %1217 = vmatpush1.msra.mxu0 %v713
    %1218 = vmatprep.subr.mxu0 %v712
    %1219 = vmatpush1.msra.mxu0 %v711
    %1220 = vmatprep.subr.mxu0 %v710
    %1221 = vmatpush1.msra.mxu0 %v709
    %1222 = vmatprep.subr.mxu0 %v708
    %1223 = vmatpush1.msra.mxu0 %v707
    %1224 = vmatprep.subr.mxu0 %v706
    %1225 = vmatpush1.msra.mxu0 %v705
    %1226 = vmatprep.subr.mxu0 %v704
    %1227 = vmatpush1.msra.mxu0 %v703
    %1228 = vmatprep.subr.mxu0 0.0
    %1229 = vmatpush2.msra.mxu0 0.0
    %1230 = vmatprep.subr.mxu0 0.0
    %1231 = vmatpush2.msra.mxu0 0.0
    %1232 = vmatprep.subr.mxu0 0.0
    %1233 = vmatpush2.msra.mxu0 0.0
    %1234 = vmatprep.subr.mxu0 0.0
    %1235 = vmatpush2.msra.mxu0 0.0
    %1236 = vmatprep.subr.mxu0 0.0
    %1237 = vmatpush2.msra.mxu0 0.0
    %1238 = vmatprep.subr.mxu0 0.0
    %1239 = vmatpush2.msra.mxu0 0.0
    %1240 = vmatprep.subr.mxu0 0.0
    %1241 = vmatpush2.msra.mxu0 0.0
    %1242 = vmatprep.subr.mxu0 0.0
    %1243 = vmatpush2.msra.mxu0 0.0
    %1244 = vmatprep.subr.mxu0 0.0
    %1245 = vmatpush2.msra.mxu0 0.0
    %1246 = vmatprep.subr.mxu0 0.0
    %1247 = vmatpush2.msra.mxu0 0.0
    %1248 = vmatprep.subr.mxu0 0.0
    %1249 = vmatpush2.msra.mxu0 0.0
    %1250 = vmatprep.subr.mxu0 0.0
    %1251 = vmatpush2.msra.mxu0 0.0
    %1252 = vmatprep.subr.mxu0 0.0
    %1253 = vmatpush2.msra.mxu0 0.0
    %1254 = vmatprep.subr.mxu0 0.0
    %1255 = vmatpush2.msra.mxu0 0.0
    %1256 = vmatprep.subr.mxu0 0.0
    %1257 = vmatpush2.msra.mxu0 0.0
    %1258 = vmatprep.subr.mxu0 0.0
    %1259 = vmatpush2.msra.mxu0 0.0
    %1260 = vmatprep.mubr.f32.mxu0 0.0
    %1261 = vmatmul.mubr.f32.gmra.mxu0 %v1194
    %v1262 = vpop.f32.mrf.mxu0
    %v1263 = vadd.f32 0.0, %v1262
    %v1264 = vpop.f32.mrf.mxu0
    %v1265 = vadd.f32 0.0, %v1264
    %1266 = vdwg.mxu0
    %v1267 = vadd.f32 %v1189, %v1263
    %v1268 = vadd.f32 %v1190, %v1265
    %v1269 = vtanh.pop %v1267
    %v1270 = vtanh.pop %v1268
    %v1271 = vxor.u32 %v1267, 2147483648
    %v1272 = vxor.u32 %v1268, 2147483648
    %v1273 = vmul.f32 %v1271, 1.442695
    %v1274 = vpow.pop %v1273
    %v1275 = vmul.f32 %v1272, 1.442695
    %v1276 = vpow.pop %v1275
    %v1277 = vadd.f32 %v1274, 1.0
    %v1278 = vadd.f32 %v1276, 1.0
    %v1279 = vrcp.pop %v1277
    %v1280 = vmul.f32 1.0, %v1279
    %v1281 = vrcp.pop %v1278
    %v1282 = vmul.f32 1.0, %v1281
    %v1283 = vsel %vm752, %v1269, %v1280
    %v1284 = vsel %vm753, %v1270, %v1282
    %v1285 = vmul.f32 %v1283, %v1186
    %v1286 = vmul.f32 %v1283, %v1284
    %1288 = vrot.lane.b32.xlu0 %v1286, 64
    %v1289 = vpop.permute.xlu0 %1288
    %v1291 = vadd.f32 %v1285, %v1289
    %v1292 = vtanh.pop %v1291
    %v1293 = vmul.f32 %v1284, %v1292
    %v1294 = vsel %vm746, %v973, %v971
    %v1295 = vsel %vm747, %v974, %v972
    %1297 = vrot.lane.b32.xlu0 %v1293, 64
    %v1298 = vpop.permute.xlu0 %1297
    %v1299 = vsel %vm760, %v1298, 0
    %1301 = vmatprep.subr.mxu0 0.0
    %1302 = vmatpush1.msra.mxu0 0.0
    %1303 = vmatprep.subr.mxu0 0.0
    %1304 = vmatpush1.msra.mxu0 0.0
    %1305 = vmatprep.subr.mxu0 0.0
    %1306 = vmatpush1.msra.mxu0 0.0
    %1307 = vmatprep.subr.mxu0 0.0
    %1308 = vmatpush1.msra.mxu0 0.0
    %1309 = vmatprep.subr.mxu0 0.0
    %1310 = vmatpush1.msra.mxu0 0.0
    %1311 = vmatprep.subr.mxu0 0.0
    %1312 = vmatpush1.msra.mxu0 0.0
    %1313 = vmatprep.subr.mxu0 0.0
    %1314 = vmatpush1.msra.mxu0 0.0
    %1315 = vmatprep.subr.mxu0 0.0
    %1316 = vmatpush1.msra.mxu0 0.0
    %1317 = vmatprep.subr.mxu0 %v718
    %1318 = vmatpush1.msra.mxu0 %v717
    %1319 = vmatprep.subr.mxu0 %v716
    %1320 = vmatpush1.msra.mxu0 %v715
    %1321 = vmatprep.subr.mxu0 %v714
    %1322 = vmatpush1.msra.mxu0 %v713
    %1323 = vmatprep.subr.mxu0 %v712
    %1324 = vmatpush1.msra.mxu0 %v711
    %1325 = vmatprep.subr.mxu0 %v710
    %1326 = vmatpush1.msra.mxu0 %v709
    %1327 = vmatprep.subr.mxu0 %v708
    %1328 = vmatpush1.msra.mxu0 %v707
    %1329 = vmatprep.subr.mxu0 %v706
    %1330 = vmatpush1.msra.mxu0 %v705
    %1331 = vmatprep.subr.mxu0 %v704
    %1332 = vmatpush1.msra.mxu0 %v703
    %1333 = vmatprep.subr.mxu0 0.0
    %1334 = vmatpush2.msra.mxu0 0.0
    %1335 = vmatprep.subr.mxu0 0.0
    %1336 = vmatpush2.msra.mxu0 0.0
    %1337 = vmatprep.subr.mxu0 0.0
    %1338 = vmatpush2.msra.mxu0 0.0
    %1339 = vmatprep.subr.mxu0 0.0
    %1340 = vmatpush2.msra.mxu0 0.0
    %1341 = vmatprep.subr.mxu0 0.0
    %1342 = vmatpush2.msra.mxu0 0.0
    %1343 = vmatprep.subr.mxu0 0.0
    %1344 = vmatpush2.msra.mxu0 0.0
    %1345 = vmatprep.subr.mxu0 0.0
    %1346 = vmatpush2.msra.mxu0 0.0
    %1347 = vmatprep.subr.mxu0 0.0
    %1348 = vmatpush2.msra.mxu0 0.0
    %1349 = vmatprep.subr.mxu0 0.0
    %1350 = vmatpush2.msra.mxu0 0.0
    %1351 = vmatprep.subr.mxu0 0.0
    %1352 = vmatpush2.msra.mxu0 0.0
    %1353 = vmatprep.subr.mxu0 0.0
    %1354 = vmatpush2.msra.mxu0 0.0
    %1355 = vmatprep.subr.mxu0 0.0
    %1356 = vmatpush2.msra.mxu0 0.0
    %1357 = vmatprep.subr.mxu0 0.0
    %1358 = vmatpush2.msra.mxu0 0.0
    %1359 = vmatprep.subr.mxu0 0.0
    %1360 = vmatpush2.msra.mxu0 0.0
    %1361 = vmatprep.subr.mxu0 0.0
    %1362 = vmatpush2.msra.mxu0 0.0
    %1363 = vmatprep.subr.mxu0 0.0
    %1364 = vmatpush2.msra.mxu0 0.0
    %1365 = vmatprep.mubr.f32.mxu0 0.0
    %1366 = vmatmul.mubr.f32.gmra.mxu0 %v1299
    %v1367 = vpop.f32.mrf.mxu0
    %v1368 = vadd.f32 0.0, %v1367
    %v1369 = vpop.f32.mrf.mxu0
    %v1370 = vadd.f32 0.0, %v1369
    %1371 = vdwg.mxu0
    %v1372 = vadd.f32 %v1294, %v1368
    %v1373 = vadd.f32 %v1295, %v1370
    %v1374 = vtanh.pop %v1372
    %v1375 = vtanh.pop %v1373
    %v1376 = vxor.u32 %v1372, 2147483648
    %v1377 = vxor.u32 %v1373, 2147483648
    %v1378 = vmul.f32 %v1376, 1.442695
    %v1379 = vpow.pop %v1378
    %v1380 = vmul.f32 %v1377, 1.442695
    %v1381 = vpow.pop %v1380
    %v1382 = vadd.f32 %v1379, 1.0
    %v1383 = vadd.f32 %v1381, 1.0
    %v1384 = vrcp.pop %v1382
    %v1385 = vmul.f32 1.0, %v1384
    %v1386 = vrcp.pop %v1383
    %v1387 = vmul.f32 1.0, %v1386
    %v1388 = vsel %vm752, %v1374, %v1385
    %v1389 = vsel %vm753, %v1375, %v1387
    %v1390 = vmul.f32 %v1388, %v1291
    %v1391 = vmul.f32 %v1388, %v1389
    %1393 = vrot.lane.b32.xlu0 %v1391, 64
    %v1394 = vpop.permute.xlu0 %1393
    %v1396 = vadd.f32 %v1390, %v1394
    %v1397 = vtanh.pop %v1396
    %v1398 = vmul.f32 %v1389, %v1397
    %v1399 = vsel %vm746, %v864, %v862
    %v1400 = vsel %vm747, %v865, %v863
    %1402 = vrot.lane.b32.xlu0 %v1398, 64
    %v1403 = vpop.permute.xlu0 %1402
    %v1404 = vsel %vm760, %v1403, 0
    %1406 = vmatprep.subr.mxu0 0.0
    %1407 = vmatpush1.msra.mxu0 0.0
    %1408 = vmatprep.subr.mxu0 0.0
    %1409 = vmatpush1.msra.mxu0 0.0
    %1410 = vmatprep.subr.mxu0 0.0
    %1411 = vmatpush1.msra.mxu0 0.0
    %1412 = vmatprep.subr.mxu0 0.0
    %1413 = vmatpush1.msra.mxu0 0.0
    %1414 = vmatprep.subr.mxu0 0.0
    %1415 = vmatpush1.msra.mxu0 0.0
    %1416 = vmatprep.subr.mxu0 0.0
    %1417 = vmatpush1.msra.mxu0 0.0
    %1418 = vmatprep.subr.mxu0 0.0
    %1419 = vmatpush1.msra.mxu0 0.0
    %1420 = vmatprep.subr.mxu0 0.0
    %1421 = vmatpush1.msra.mxu0 0.0
    %1422 = vmatprep.subr.mxu0 %v718
    %1423 = vmatpush1.msra.mxu0 %v717
    %1424 = vmatprep.subr.mxu0 %v716
    %1425 = vmatpush1.msra.mxu0 %v715
    %1426 = vmatprep.subr.mxu0 %v714
    %1427 = vmatpush1.msra.mxu0 %v713
    %1428 = vmatprep.subr.mxu0 %v712
    %1429 = vmatpush1.msra.mxu0 %v711
    %1430 = vmatprep.subr.mxu0 %v710
    %1431 = vmatpush1.msra.mxu0 %v709
    %1432 = vmatprep.subr.mxu0 %v708
    %1433 = vmatpush1.msra.mxu0 %v707
    %1434 = vmatprep.subr.mxu0 %v706
    %1435 = vmatpush1.msra.mxu0 %v705
    %1436 = vmatprep.subr.mxu0 %v704
    %1437 = vmatpush1.msra.mxu0 %v703
    %1438 = vmatprep.subr.mxu0 0.0
    %1439 = vmatpush2.msra.mxu0 0.0
    %1440 = vmatprep.subr.mxu0 0.0
    %1441 = vmatpush2.msra.mxu0 0.0
    %1442 = vmatprep.subr.mxu0 0.0
    %1443 = vmatpush2.msra.mxu0 0.0
    %1444 = vmatprep.subr.mxu0 0.0
    %1445 = vmatpush2.msra.mxu0 0.0
    %1446 = vmatprep.subr.mxu0 0.0
    %1447 = vmatpush2.msra.mxu0 0.0
    %1448 = vmatprep.subr.mxu0 0.0
    %1449 = vmatpush2.msra.mxu0 0.0
    %1450 = vmatprep.subr.mxu0 0.0
    %1451 = vmatpush2.msra.mxu0 0.0
    %1452 = vmatprep.subr.mxu0 0.0
    %1453 = vmatpush2.msra.mxu0 0.0
    %1454 = vmatprep.subr.mxu0 0.0
    %1455 = vmatpush2.msra.mxu0 0.0
    %1456 = vmatprep.subr.mxu0 0.0
    %1457 = vmatpush2.msra.mxu0 0.0
    %1458 = vmatprep.subr.mxu0 0.0
    %1459 = vmatpush2.msra.mxu0 0.0
    %1460 = vmatprep.subr.mxu0 0.0
    %1461 = vmatpush2.msra.mxu0 0.0
    %1462 = vmatprep.subr.mxu0 0.0
    %1463 = vmatpush2.msra.mxu0 0.0
    %1464 = vmatprep.subr.mxu0 0.0
    %1465 = vmatpush2.msra.mxu0 0.0
    %1466 = vmatprep.subr.mxu0 0.0
    %1467 = vmatpush2.msra.mxu0 0.0
    %1468 = vmatprep.subr.mxu0 0.0
    %1469 = vmatpush2.msra.mxu0 0.0
    %1470 = vmatprep.mubr.f32.mxu0 0.0
    %1471 = vmatmul.mubr.f32.gmra.mxu0 %v1404
    %v1472 = vpop.f32.mrf.mxu0
    %v1473 = vadd.f32 0.0, %v1472
    %v1474 = vpop.f32.mrf.mxu0
    %v1475 = vadd.f32 0.0, %v1474
    %1476 = vdwg.mxu0
    %v1477 = vadd.f32 %v1399, %v1473
    %v1478 = vadd.f32 %v1400, %v1475
    %v1479 = vtanh.pop %v1477
    %v1480 = vtanh.pop %v1478
    %v1481 = vxor.u32 %v1477, 2147483648
    %v1482 = vxor.u32 %v1478, 2147483648
    %v1483 = vmul.f32 %v1481, 1.442695
    %v1484 = vpow.pop %v1483
    %v1485 = vmul.f32 %v1482, 1.442695
    %v1486 = vpow.pop %v1485
    %v1487 = vadd.f32 %v1484, 1.0
    %v1488 = vadd.f32 %v1486, 1.0
    %v1489 = vrcp.pop %v1487
    %v1490 = vmul.f32 1.0, %v1489
    %v1491 = vrcp.pop %v1488
    %v1492 = vmul.f32 1.0, %v1491
    %v1493 = vsel %vm752, %v1479, %v1490
    %v1494 = vsel %vm753, %v1480, %v1492
    %v1495 = vmul.f32 %v1493, %v1396
    %v1496 = vmul.f32 %v1493, %v1494
    %1498 = vrot.lane.b32.xlu0 %v1496, 64
    %v1499 = vpop.permute.xlu0 %1498
    %v1501 = vadd.f32 %v1495, %v1499
    %v1502 = vtanh.pop %v1501
    %v1503 = vmul.f32 %v1494, %v1502
    %v1504 = vsel %vm746, %v756, %v754
    %v1505 = vsel %vm747, %v757, %v755
    %1507 = vrot.lane.b32.xlu0 %v1503, 64
    %v1508 = vpop.permute.xlu0 %1507
    %v1509 = vsel %vm760, %v1508, 0
    %1511 = vmatprep.subr.mxu0 0.0
    %1512 = vmatpush1.msra.mxu0 0.0
    %1513 = vmatprep.subr.mxu0 0.0
    %1514 = vmatpush1.msra.mxu0 0.0
    %1515 = vmatprep.subr.mxu0 0.0
    %1516 = vmatpush1.msra.mxu0 0.0
    %1517 = vmatprep.subr.mxu0 0.0
    %1518 = vmatpush1.msra.mxu0 0.0
    %1519 = vmatprep.subr.mxu0 0.0
    %1520 = vmatpush1.msra.mxu0 0.0
    %1521 = vmatprep.subr.mxu0 0.0
    %1522 = vmatpush1.msra.mxu0 0.0
    %1523 = vmatprep.subr.mxu0 0.0
    %1524 = vmatpush1.msra.mxu0 0.0
    %1525 = vmatprep.subr.mxu0 0.0
    %1526 = vmatpush1.msra.mxu0 0.0
    %1527 = vmatprep.subr.mxu0 %v718
    %1528 = vmatpush1.msra.mxu0 %v717
    %1529 = vmatprep.subr.mxu0 %v716
    %1530 = vmatpush1.msra.mxu0 %v715
    %1531 = vmatprep.subr.mxu0 %v714
    %1532 = vmatpush1.msra.mxu0 %v713
    %1533 = vmatprep.subr.mxu0 %v712
    %1534 = vmatpush1.msra.mxu0 %v711
    %1535 = vmatprep.subr.mxu0 %v710
    %1536 = vmatpush1.msra.mxu0 %v709
    %1537 = vmatprep.subr.mxu0 %v708
    %1538 = vmatpush1.msra.mxu0 %v707
    %1539 = vmatprep.subr.mxu0 %v706
    %1540 = vmatpush1.msra.mxu0 %v705
    %1541 = vmatprep.subr.mxu0 %v704
    %1542 = vmatpush1.msra.mxu0 %v703
    %1543 = vmatprep.subr.mxu0 0.0
    %1544 = vmatpush2.msra.mxu0 0.0
    %1545 = vmatprep.subr.mxu0 0.0
    %1546 = vmatpush2.msra.mxu0 0.0
    %1547 = vmatprep.subr.mxu0 0.0
    %1548 = vmatpush2.msra.mxu0 0.0
    %1549 = vmatprep.subr.mxu0 0.0
    %1550 = vmatpush2.msra.mxu0 0.0
    %1551 = vmatprep.subr.mxu0 0.0
    %1552 = vmatpush2.msra.mxu0 0.0
    %1553 = vmatprep.subr.mxu0 0.0
    %1554 = vmatpush2.msra.mxu0 0.0
    %1555 = vmatprep.subr.mxu0 0.0
    %1556 = vmatpush2.msra.mxu0 0.0
    %1557 = vmatprep.subr.mxu0 0.0
    %1558 = vmatpush2.msra.mxu0 0.0
    %1559 = vmatprep.subr.mxu0 0.0
    %1560 = vmatpush2.msra.mxu0 0.0
    %1561 = vmatprep.subr.mxu0 0.0
    %1562 = vmatpush2.msra.mxu0 0.0
    %1563 = vmatprep.subr.mxu0 0.0
    %1564 = vmatpush2.msra.mxu0 0.0
    %1565 = vmatprep.subr.mxu0 0.0
    %1566 = vmatpush2.msra.mxu0 0.0
    %1567 = vmatprep.subr.mxu0 0.0
    %1568 = vmatpush2.msra.mxu0 0.0
    %1569 = vmatprep.subr.mxu0 0.0
    %1570 = vmatpush2.msra.mxu0 0.0
    %1571 = vmatprep.subr.mxu0 0.0
    %1572 = vmatpush2.msra.mxu0 0.0
    %1573 = vmatprep.subr.mxu0 0.0
    %1574 = vmatpush2.msra.mxu0 0.0
    %1575 = vmatprep.mubr.f32.mxu0 0.0
    %1576 = vmatmul.mubr.f32.gmra.mxu0 %v1509
    %v1577 = vpop.f32.mrf.mxu0
    %v1578 = vadd.f32 0.0, %v1577
    %v1579 = vpop.f32.mrf.mxu0
    %v1580 = vadd.f32 0.0, %v1579
    %1581 = vdwg.mxu0
    %v1582 = vadd.f32 %v1504, %v1578
    %v1583 = vadd.f32 %v1505, %v1580
    %v1584 = vtanh.pop %v1582
    %v1585 = vtanh.pop %v1583
    %v1586 = vxor.u32 %v1582, 2147483648
    %v1587 = vxor.u32 %v1583, 2147483648
    %v1588 = vmul.f32 %v1586, 1.442695
    %v1589 = vpow.pop %v1588
    %v1590 = vmul.f32 %v1587, 1.442695
    %v1591 = vpow.pop %v1590
    %v1592 = vadd.f32 %v1589, 1.0
    %v1593 = vadd.f32 %v1591, 1.0
    %v1594 = vrcp.pop %v1592
    %v1595 = vmul.f32 1.0, %v1594
    %v1596 = vrcp.pop %v1593
    %v1597 = vmul.f32 1.0, %v1596
    %v1598 = vsel %vm752, %v1584, %v1595
    %v1599 = vsel %vm753, %v1585, %v1597
    %v1600 = vmul.f32 %v1598, %v1501
    %v1601 = vmul.f32 %v1598, %v1599
    %1603 = vrot.lane.b32.xlu0 %v1601, 64
    %v1604 = vpop.permute.xlu0 %1603
    %v1606 = vadd.f32 %v1600, %v1604
    %v1607 = vtanh.pop %v1606
    %v1608 = vmul.f32 %v1599, %v1607
    %v1609 = vld [vmem:[%s4] sm:$0xff]
    %v1610 = vld [vmem:[%s4 + $0x8] sm:$0xff]
    %v1611 = vld [vmem:[%s4 + $0x10] sm:$0xff]
    %v1612 = vld [vmem:[%s4 + $0x18] sm:$0xff]
    %v1613 = vld [vmem:[%s4 + $0x20] sm:$0xff]
    %v1614 = vld [vmem:[%s4 + $0x28] sm:$0xff]
    %v1615 = vld [vmem:[%s4 + $0x30] sm:$0xff]
    %v1616 = vld [vmem:[%s4 + $0x38] sm:$0xff]
    %v1617 = vld [vmem:[%s5] sm:$0x1]
    %v1619 = vlaneseq
    %v1620 = vshrl.u32 %v1619, 7
    %v1621 = vsub.s32 0, %v1620
    %v1622 = vrot.slane %v1617, %v1621
    %1625 = vrot.lane.b32.xlu0 %v1608, 64
    %v1626 = vpop.permute.xlu0 %1625
    %v1627 = vsel %vm760, %v1626, 0
    %1629 = vmatprep.subr.mxu0 0.0
    %1630 = vmatpush1.msra.mxu0 0.0
    %1631 = vmatprep.subr.mxu0 0.0
    %1632 = vmatpush1.msra.mxu0 0.0
    %1633 = vmatprep.subr.mxu0 0.0
    %1634 = vmatpush1.msra.mxu0 0.0
    %1635 = vmatprep.subr.mxu0 0.0
    %1636 = vmatpush1.msra.mxu0 0.0
    %1637 = vmatprep.subr.mxu0 0.0
    %1638 = vmatpush1.msra.mxu0 0.0
    %1639 = vmatprep.subr.mxu0 0.0
    %1640 = vmatpush1.msra.mxu0 0.0
    %1641 = vmatprep.subr.mxu0 0.0
    %1642 = vmatpush1.msra.mxu0 0.0
    %1643 = vmatprep.subr.mxu0 0.0
    %1644 = vmatpush1.msra.mxu0 0.0
    %1645 = vmatprep.subr.mxu0 0.0
    %1646 = vmatpush1.msra.mxu0 %v1616
    %1647 = vmatprep.subr.mxu0 0.0
    %1648 = vmatpush1.msra.mxu0 %v1615
    %1649 = vmatprep.subr.mxu0 0.0
    %1650 = vmatpush1.msra.mxu0 %v1614
    %1651 = vmatprep.subr.mxu0 0.0
    %1652 = vmatpush1.msra.mxu0 %v1613
    %1653 = vmatprep.subr.mxu0 0.0
    %1654 = vmatpush1.msra.mxu0 %v1612
    %1655 = vmatprep.subr.mxu0 0.0
    %1656 = vmatpush1.msra.mxu0 %v1611
    %1657 = vmatprep.subr.mxu0 0.0
    %1658 = vmatpush1.msra.mxu0 %v1610
    %1659 = vmatprep.subr.mxu0 0.0
    %1660 = vmatpush1.msra.mxu0 %v1609
    %1661 = vmatprep.subr.mxu0 0.0
    %1662 = vmatpush2.msra.mxu0 0.0
    %1663 = vmatprep.subr.mxu0 0.0
    %1664 = vmatpush2.msra.mxu0 0.0
    %1665 = vmatprep.subr.mxu0 0.0
    %1666 = vmatpush2.msra.mxu0 0.0
    %1667 = vmatprep.subr.mxu0 0.0
    %1668 = vmatpush2.msra.mxu0 0.0
    %1669 = vmatprep.subr.mxu0 0.0
    %1670 = vmatpush2.msra.mxu0 0.0
    %1671 = vmatprep.subr.mxu0 0.0
    %1672 = vmatpush2.msra.mxu0 0.0
    %1673 = vmatprep.subr.mxu0 0.0
    %1674 = vmatpush2.msra.mxu0 0.0
    %1675 = vmatprep.subr.mxu0 0.0
    %1676 = vmatpush2.msra.mxu0 0.0
    %1677 = vmatprep.subr.mxu0 0.0
    %1678 = vmatpush2.msra.mxu0 0.0
    %1679 = vmatprep.subr.mxu0 0.0
    %1680 = vmatpush2.msra.mxu0 0.0
    %1681 = vmatprep.subr.mxu0 0.0
    %1682 = vmatpush2.msra.mxu0 0.0
    %1683 = vmatprep.subr.mxu0 0.0
    %1684 = vmatpush2.msra.mxu0 0.0
    %1685 = vmatprep.subr.mxu0 0.0
    %1686 = vmatpush2.msra.mxu0 0.0
    %1687 = vmatprep.subr.mxu0 0.0
    %1688 = vmatpush2.msra.mxu0 0.0
    %1689 = vmatprep.subr.mxu0 0.0
    %1690 = vmatpush2.msra.mxu0 0.0
    %1691 = vmatprep.subr.mxu0 0.0
    %1692 = vmatpush2.msra.mxu0 0.0
    %1693 = vmatprep.mubr.f32.mxu0 0.0
    %1694 = vmatmul.mubr.f32.gmra.mxu0 %v1627
    %v1695 = vpop.f32.mrf.mxu0
    %v1696 = vadd.f32 %v1622, %v1695
    %v1697 = vpop.f32.mrf.mxu0
    %1698 = vdwg.mxu0
    %v1699 = vxor.u32 %v1696, 2147483648
    %v1700 = vmul.f32 %v1699, 1.442695
    %v1701 = vpow.pop %v1700
    %v1702 = vadd.f32 %v1701, 1.0
    %v1703 = vrcp.pop %v1702
    %v1704 = vmul.f32 1.0, %v1703
    %vm1705 = vcmask 130048
    %1706 = vst.msk [vmem:[#allocation8] sm:$0xff] %vm1705, %v1704
    // Predicated region
    $region34: #{tpu_custom_call.1} parent=1 // pred_check
      _
    $region35: #{tpu_custom_call.1} parent=1 // pred_check_branch
      %1708 = sbr.rel (0) target = $region37
    $region36: #{tpu_custom_call.1} parent=1 // pred_region
      %s1710 = ssub.s32 128, 128
      %1711 = vsyncadd [#allocation5], %s1710
      %s1713 = sshll.u32 [#allocation8], 4
      %s1714 = int_to_ptr.vmem [resolvable:$true] %s1713
      %1716 = dma.vmem_to_hbm [thread:$0]  %s1714, 128, %s6, [#allocation5]
    $region37: #{tpu_custom_call.1} parent=1 // pred_fallthru
      _
    // Predicated region
    $region38: #{tpu_custom_call.1} parent=1 // pred_check
      _
    $region39: #{tpu_custom_call.1} parent=1 // pred_check_branch
      %1718 = sbr.rel (0) target = $region41
    $region40: #{tpu_custom_call.1} parent=1 // pred_region
      %1719 = dma.done [#allocation5], 128
    $region41: #{tpu_custom_call.1} parent=1 // pred_fallthru
      _
    %1720 = vsyncpa [#allocation4], 1
    %1721 = vsyncpa [#allocation7], 1
    %1722 = vsyncpa [#allocation5], 1

</llo_original>
